<compile_context>
chip_gen: v7x
topology: tpu7x:2x2x1
jax: 0.10.0
libtpu: 0.0.40
codegen_flags: <defaults>
</compile_context>

<pallas_src>
import functools

import jax
import jax.numpy as jnp
from jax.experimental import pallas as pl
from jax.experimental.pallas import tpu as pltpu

INPUT_CHANNELS = 1
OUTPUT_CHANNELS = 51
LANE = 128


def _round_up(x, m):
    return (x + m - 1) // m * m


def _vmem_budget_bytes():
    """~70% of physical VMEM (128 MiB v5e/v6e, 64 MiB v7x); conservative fallback."""
    cap = 64 * 1024 * 1024
    try:
        info = pltpu.get_tpu_info()
        cap = int(getattr(info, "vmem_capacity_bytes", cap) or cap)
    except Exception:
        pass
    return int(cap * 0.7)


# ---------------------------------------------------------------------------
# Kernels
# ---------------------------------------------------------------------------

def _conv3_fused_kernel(adj_ref, h0_ref, w1_ref, b1_ref, w2_ref, b2_ref,
                        w3_ref, b3_ref, out_ref, *, c_in_pad, h_pad):
    """All three GraphConv layers with the bf16 adjacency resident in VMEM.

    Per layer:  agg = A @ h ;  y = agg @ W_rel + h @ W_root + b ;  h <- act(y)
    """
    adj = adj_ref[...]                                     # (n_pad, n_pad) bf16, read once

    def layer(h, w_ref, b_ref, f_in, relu):
        agg = jnp.dot(adj, h, preferred_element_type=jnp.float32)
        y = (jnp.dot(agg.astype(jnp.bfloat16), w_ref[:f_in, :],
                     preferred_element_type=jnp.float32)
             + jnp.dot(h, w_ref[f_in:, :], preferred_element_type=jnp.float32)
             + b_ref[...])
        if relu:
            y = jnp.maximum(y, 0.0)
        return y.astype(jnp.bfloat16)

    h1 = layer(h0_ref[...], w1_ref, b1_ref, c_in_pad, True)
    h2 = layer(h1, w2_ref, b2_ref, h_pad, True)
    h3 = layer(h2, w3_ref, b3_ref, h_pad, False)           # no relu after conv3
    out_ref[...] = h3


def _conv_stream_kernel(adj_ref, h_ref, w_ref, b_ref, out_ref, acc_ref,
                        *, tm, tk, f_in_pad, apply_relu):
    """One GraphConv layer tiled over (row tiles i, contraction tiles k).

    The full feature matrix h stays resident in VMEM (constant-index block); only the
    adjacency streams from HBM.  acc[i] += adj[i,k] @ h[k*tk : (k+1)*tk]; at the last k:
      out[i] = act(acc[i] @ W_rel + h[i*tm : (i+1)*tm] @ W_root + b)
    """
    i = pl.program_id(0)
    k = pl.program_id(1)

    @pl.when(k == 0)
    def _():
        acc_ref[...] = jnp.zeros_like(acc_ref)

    ks = pl.multiple_of(k * tk, tk)
    acc_ref[...] += jnp.dot(adj_ref[...], h_ref[pl.ds(ks, tk), :],
                            preferred_element_type=jnp.float32)

    @pl.when(k == pl.num_programs(1) - 1)
    def _():
        row = pl.multiple_of(i * tm, tm)
        h_root = h_ref[pl.ds(row, tm), :]
        y = (jnp.dot(acc_ref[...].astype(jnp.bfloat16), w_ref[:f_in_pad, :],
                     preferred_element_type=jnp.float32)
             + jnp.dot(h_root, w_ref[f_in_pad:, :],
                       preferred_element_type=jnp.float32)
             + b_ref[...])
        if apply_relu:
            y = jnp.maximum(y, 0.0)
        out_ref[...] = y.astype(out_ref.dtype)


def _pool_lin_kernel(pool_ref, h_ref, inv_ref, wl_ref, bl_ref, out_ref, acc_ref):
    """global_mean_pool (bf16 0/1 pool matmul, f32 accumulate, 1/count in epilogue)
    followed by the final Linear kept in f32."""
    k = pl.program_id(0)

    @pl.when(k == 0)
    def _():
        acc_ref[...] = jnp.zeros_like(acc_ref)

    acc_ref[...] += jnp.dot(pool_ref[...], h_ref[...],
                            preferred_element_type=jnp.float32)

    @pl.when(k == pl.num_programs(0) - 1)
    def _():
        pooled = acc_ref[...] * inv_ref[...]               # mean = sum * (1/count), f32
        out_ref[...] = (jnp.dot(pooled, wl_ref[...],
                                preferred_element_type=jnp.float32)
                        + bl_ref[...])


# ---------------------------------------------------------------------------
# pallas_call wrappers
# ---------------------------------------------------------------------------

def _conv3_fused(adj, h0, w1, b1, w2, b2, w3, b3, *, c_in_pad, h_pad, vmem_limit):
    n_pad = adj.shape[0]
    kernel = functools.partial(_conv3_fused_kernel, c_in_pad=c_in_pad, h_pad=h_pad)
    # No grid: all operands (adjacency included) live in VMEM for all three layers.
    return pl.pallas_call(
        kernel,
        out_shape=jax.ShapeDtypeStruct((n_pad, h_pad), jnp.bfloat16),
        compiler_params=pltpu.CompilerParams(vmem_limit_bytes=vmem_limit),
    )(adj, h0, w1, b1, w2, b2, w3, b3)


def _conv_stream_layer(adj, h_in, w_fused, bias, *, f_in_pad, f_out_pad, tm, tk,
                       apply_relu, vmem_limit):
    n_pad = adj.shape[0]
    grid = (n_pad // tm, n_pad // tk)
    kernel = functools.partial(_conv_stream_kernel, tm=tm, tk=tk,
                               f_in_pad=f_in_pad, apply_relu=apply_relu)
    return pl.pallas_call(
        kernel,
        out_shape=jax.ShapeDtypeStruct((n_pad, f_out_pad), jnp.bfloat16),
        grid_spec=pltpu.PrefetchScalarGridSpec(
            num_scalar_prefetch=0,
            grid=grid,
            in_specs=[
                pl.BlockSpec((tm, tk), lambda i, k: (i, k)),            # adj tile (streamed)
                pl.BlockSpec((n_pad, f_in_pad), lambda i, k: (0, 0)),   # h resident in VMEM
                pl.BlockSpec((2 * f_in_pad, f_out_pad), lambda i, k: (0, 0)),  # [W_rel;W_root]
                pl.BlockSpec((1, f_out_pad), lambda i, k: (0, 0)),      # bias
            ],
            out_specs=pl.BlockSpec((tm, f_out_pad), lambda i, k: (i, 0)),
            scratch_shapes=[pltpu.VMEM((tm, f_in_pad), jnp.float32)],   # f32 accumulator
        ),
        compiler_params=pltpu.CompilerParams(
            dimension_semantics=("parallel", "arbitrary"),
            vmem_limit_bytes=vmem_limit,
        ),
    )(adj, h_in, w_fused, bias)


def _pool_lin(pool, h, inv_counts, w_lin, b_lin, *, vmem_limit):
    g_pad, n_pad = pool.shape
    h_pad = h.shape[1]
    o_pad = w_lin.shape[1]
    tk = 128
    for cand in (2048, 1024, 512, 256):
        if n_pad % cand == 0:
            tk = cand
            break
    grid = (n_pad // tk,)
    return pl.pallas_call(
        _pool_lin_kernel,
        out_shape=jax.ShapeDtypeStruct((g_pad, o_pad), jnp.float32),
        grid_spec=pltpu.PrefetchScalarGridSpec(
            num_scalar_prefetch=0,
            grid=grid,
            in_specs=[
                pl.BlockSpec((g_pad, tk), lambda k: (0, k)),      # bf16 0/1 pool matrix
                pl.BlockSpec((tk, h_pad), lambda k: (k, 0)),      # bf16 node features
                pl.BlockSpec((g_pad, 1), lambda k: (0, 0)),       # f32 1/count per graph
                pl.BlockSpec((h_pad, o_pad), lambda k: (0, 0)),   # f32 final Linear weight
                pl.BlockSpec((1, o_pad), lambda k: (0, 0)),       # f32 final Linear bias
            ],
            out_specs=pl.BlockSpec((g_pad, o_pad), lambda k: (0, 0)),
            scratch_shapes=[pltpu.VMEM((g_pad, h_pad), jnp.float32)],
        ),
        compiler_params=pltpu.CompilerParams(
            dimension_semantics=("arbitrary",),
            vmem_limit_bytes=vmem_limit,
        ),
    )(pool, h, inv_counts, w_lin, b_lin)


# ---------------------------------------------------------------------------
# Host-side glue
# ---------------------------------------------------------------------------

def _pack_conv_params(w_rel, w_root, b, f_in_pad, f_out_pad):
    """Pack [W_rel; W_root] into one lane-/sublane-padded bf16 weight + padded f32 bias."""
    f_in, f_out = w_rel.shape
    w_fused = jnp.zeros((2 * f_in_pad, f_out_pad), jnp.float32)
    w_fused = w_fused.at[:f_in, :f_out].set(w_rel)
    w_fused = w_fused.at[f_in_pad:f_in_pad + f_in, :f_out].set(w_root)
    b_pad = jnp.zeros((1, f_out_pad), jnp.float32).at[:, :f_out].set(b)
    return w_fused.astype(jnp.bfloat16), b_pad


def gnn_forward(params, x, edge_index, batch, num_graphs, edge_weight=None):
    n = x.shape[0]
    hidden = params["w2_rel"].shape[0]
    c_in = params["w1_rel"].shape[0]
    c_in_pad = _round_up(c_in, LANE)
    h_pad = _round_up(hidden, LANE)
    o_pad = _round_up(OUTPUT_CHANNELS, LANE)
    g_pad = _round_up(num_graphs, 8)

    budget = _vmem_budget_bytes()

    # Fast path: keep the whole bf16 adjacency resident across all three conv layers.
    n_pad_fused = _round_up(n, LANE)
    adj_bytes = 2 * n_pad_fused * n_pad_fused
    act_bytes = n_pad_fused * (c_in_pad + 3 * h_pad) * 2 + 2 * n_pad_fused * h_pad * 4
    use_fused = adj_bytes + act_bytes + (4 << 20) <= budget

    if use_fused:
        n_pad, tm, tk = n_pad_fused, None, None
    else:
        tk = 1024 if n >= 8192 else 512
        n_pad = _round_up(n, tk)
        tm = 512
        while tm > 128 and n_pad // tm < 2:   # keep >= 2 row tiles for v7x dual-TC
            tm //= 2

    # Dense adjacency A[dst, src] += w  (edge_index[0]=src j, edge_index[1]=dst i), bf16.
    if edge_weight is None:
        adj = jnp.zeros((n_pad, n_pad), jnp.bfloat16)
        adj = adj.at[edge_index[1], edge_index[0]].add(
            jnp.ones((edge_index.shape[1],), jnp.bfloat16))     # 0/1 exact in bf16
    else:
        # NOTE: bf16 quantizes arbitrary edge weights to ~8 mantissa bits.
        adj_f32 = jnp.zeros((n_pad, n_pad), jnp.float32)
        adj_f32 = adj_f32.at[edge_index[1], edge_index[0]].add(
            edge_weight.astype(jnp.float32))
        adj = adj_f32.astype(jnp.bfloat16)

    # Node features, zero-padded to a lane-dense width.
    h0 = jnp.zeros((n_pad, c_in_pad), jnp.bfloat16)
    h0 = h0.at[:n, :c_in].set(x.astype(jnp.bfloat16))

    # Mean pool: exact bf16 0/1 membership matrix + f32 1/count vector (applied in-kernel).
    onehot = (batch[None, :] == jnp.arange(num_graphs)[:, None])
    counts = jnp.maximum(onehot.sum(axis=1, keepdims=True).astype(jnp.float32), 1.0)
    pool = jnp.zeros((g_pad, n_pad), jnp.bfloat16)
    pool = pool.at[:num_graphs, :n].set(onehot.astype(jnp.bfloat16))
    inv_counts = jnp.zeros((g_pad, 1), jnp.float32).at[:num_graphs].set(1.0 / counts)

    # Packed / padded parameters.
    w1, b1 = _pack_conv_params(params["w1_rel"], params["w1_root"], params["b1"],
                               c_in_pad, h_pad)
    w2, b2 = _pack_conv_params(params["w2_rel"], params["w2_root"], params["b2"],
                               h_pad, h_pad)
    w3, b3 = _pack_conv_params(params["w3_rel"], params["w3_root"], params["b3"],
                               h_pad, h_pad)
    w_lin = jnp.zeros((h_pad, o_pad), jnp.float32)
    w_lin = w_lin.at[:hidden, :OUTPUT_CHANNELS].set(params["w_lin"])
    b_lin = jnp.zeros((1, o_pad), jnp.float32)
    b_lin = b_lin.at[:, :OUTPUT_CHANNELS].set(params["b_lin"])

    vmem_limit = budget

    if use_fused:
        h3 = _conv3_fused(adj, h0, w1, b1, w2, b2, w3, b3,
                          c_in_pad=c_in_pad, h_pad=h_pad, vmem_limit=vmem_limit)
    else:
        # TODO(synk): for huge graphs where the resident h block no longer fits next to
        # the adjacency stream, fall back to per-k-tile h streaming; for sparse graphs
        # replace the dense A@H with an edge-list segment-sum kernel (scalar prefetch).
        h1 = _conv_stream_layer(adj, h0, w1, b1, f_in_pad=c_in_pad, f_out_pad=h_pad,
                                tm=tm, tk=tk, apply_relu=True, vmem_limit=vmem_limit)
        h2 = _conv_stream_layer(adj, h1, w2, b2, f_in_pad=h_pad, f_out_pad=h_pad,
                                tm=tm, tk=tk, apply_relu=True, vmem_limit=vmem_limit)
        h3 = _conv_stream_layer(adj, h2, w3, b3, f_in_pad=h_pad, f_out_pad=h_pad,
                                tm=tm, tk=tk, apply_relu=False, vmem_limit=vmem_limit)

    out = _pool_lin(pool, h3, inv_counts, w_lin, b_lin, vmem_limit=vmem_limit)
    return out[:num_graphs, :OUTPUT_CHANNELS]


def init_params(key, hidden_channels):
    """Deterministic torch-Linear-style init. Weights stored [in, out], biases [1, out]."""
    ks = jax.random.split(key, 11)

    def lin_w(k, fin, fout):
        bound = 1.0 / jnp.sqrt(jnp.float32(fin))
        return jax.random.uniform(k, (fin, fout), jnp.float32, -bound, bound)

    def lin_b(k, fin, fout):
        bound = 1.0 / jnp.sqrt(jnp.float32(fin))
        return jax.random.uniform(k, (1, fout), jnp.float32, -bound, bound)

    H = hidden_channels
    return {
        "w1_rel": lin_w(ks[0], INPUT_CHANNELS, H), "w1_root": lin_w(ks[1], INPUT_CHANNELS, H),
        "b1": lin_b(ks[2], INPUT_CHANNELS, H),
        "w2_rel": lin_w(ks[3], H, H), "w2_root": lin_w(ks[4], H, H),
        "b2": lin_b(ks[5], H, H),
        "w3_rel": lin_w(ks[6], H, H), "w3_root": lin_w(ks[7], H, H),
        "b3": lin_b(ks[8], H, H),
        "w_lin": lin_w(ks[9], H, OUTPUT_CHANNELS),
        "b_lin": lin_b(ks[10], H, OUTPUT_CHANNELS),
    }


def _reference_forward(params, x, edge_index, batch, num_graphs, edge_weight=None):
    """Pure-JAX f32 reference of the PyG GNN forward, for validation."""
    n = x.shape[0]
    e = edge_index.shape[1]
    if edge_weight is None:
        edge_weight = jnp.ones((e,), jnp.float32)
    adj = jnp.zeros((n, n), jnp.float32).at[edge_index[1], edge_index[0]].add(edge_weight)

    def conv(h, w_rel, w_root, b):
        return (adj @ h) @ w_rel + h @ w_root + b

    h = jax.nn.relu(conv(x, params["w1_rel"], params["w1_root"], params["b1"]))
    h = jax.nn.relu(conv(h, params["w2_rel"], params["w2_root"], params["b2"]))
    h = conv(h, params["w3_rel"], params["w3_root"], params["b3"])
    onehot = (batch[None, :] == jnp.arange(num_graphs)[:, None]).astype(jnp.float32)
    pooled = (onehot @ h) / jnp.maximum(onehot.sum(axis=1, keepdims=True), 1.0)
    return pooled @ params["w_lin"] + params["b_lin"]


if __name__ == "__main__":
    key = jax.random.PRNGKey(0)
    k_param, k_x = jax.random.split(key, 2)

    hidden_channels = 32
    num_nodes = 16          # 2 graphs x 8 nodes
    num_graphs = 2

    params = init_params(k_param, hidden_channels)

    # Node features: [N, INPUT_CHANNELS]
    x = jax.random.normal(k_x, (num_nodes, INPUT_CHANNELS), jnp.float32)

    # Deterministic edges: bidirectional ring inside each graph of 8 nodes.
    src, dst = [], []
    for g in range(num_graphs):
        base = g * 8
        for node in range(8):
            a, b = base + node, base + (node + 1) % 8
            src += [a, b]
            dst += [b, a]
    edge_index = jnp.array([src, dst], dtype=jnp.int32)       # [2, E]
    edge_weight = None                                         # exercise default (ones)

    # batch[n] = graph id of node n
    batch = jnp.array([g for g in range(num_graphs) for _ in range(8)], dtype=jnp.int32)

    out = gnn_forward(params, x, edge_index, batch, num_graphs, edge_weight)
    out = jax.block_until_ready(out)
    assert out.shape == (num_graphs, OUTPUT_CHANNELS)

    # Validate bf16-operand / f32-accumulate kernels against the f32 reference.
    ref = _reference_forward(params, x, edge_index, batch, num_graphs, edge_weight)
    assert bool(jnp.allclose(out, ref, rtol=5e-2, atol=8e-2)), "mismatch vs f32 reference"

    print("KERNEL_OK")
</pallas_src>

<mosaic_0001>
module attributes {stable_mosaic.version = 11 : i64} {
  func.func @_conv3_fused_kernel(%arg0: memref<128x128xbf16, #tpu.memory_space<vmem>>, %arg1: memref<128x128xbf16, #tpu.memory_space<vmem>>, %arg2: memref<256x128xbf16, #tpu.memory_space<vmem>>, %arg3: memref<1x128xf32, #tpu.memory_space<vmem>>, %arg4: memref<256x128xbf16, #tpu.memory_space<vmem>>, %arg5: memref<1x128xf32, #tpu.memory_space<vmem>>, %arg6: memref<256x128xbf16, #tpu.memory_space<vmem>>, %arg7: memref<1x128xf32, #tpu.memory_space<vmem>>, %arg8: memref<128x128xbf16, #tpu.memory_space<vmem>>) attributes {dimension_semantics = [], scalar_prefetch = 0 : i64, scratch_operands = 0 : i64, tpu.core_type = #tpu.core_type<tc>} {
    %c0 = arith.constant 0 : index
    %c0_0 = arith.constant 0 : index
    %0 = vector.load %arg0[%c0, %c0_0] : memref<128x128xbf16, #tpu.memory_space<vmem>>, vector<128x128xbf16>
    %c0_1 = arith.constant 0 : index
    %c0_2 = arith.constant 0 : index
    %1 = vector.load %arg1[%c0_1, %c0_2] : memref<128x128xbf16, #tpu.memory_space<vmem>>, vector<128x128xbf16>
    %cst = arith.constant dense<0.000000e+00> : vector<128x128xf32>
    %2 = tpu.matmul %0, %1, %cst {dimension_numbers = #tpu.dot_dimension_numbers<[1], [0], [0], [1], [0, 0, 1, 1], [], []>} : vector<128x128xbf16>, vector<128x128xbf16>, vector<128x128xf32> -> vector<128x128xf32>
    %3 = arith.truncf %2 : vector<128x128xf32> to vector<128x128xbf16>
    %c0_3 = arith.constant 0 : index
    %c0_4 = arith.constant 0 : index
    %4 = vector.load %arg2[%c0_3, %c0_4] : memref<256x128xbf16, #tpu.memory_space<vmem>>, vector<128x128xbf16>
    %cst_5 = arith.constant dense<0.000000e+00> : vector<128x128xf32>
    %5 = tpu.matmul %3, %4, %cst_5 {dimension_numbers = #tpu.dot_dimension_numbers<[1], [0], [0], [1], [0, 0, 1, 1], [], []>} : vector<128x128xbf16>, vector<128x128xbf16>, vector<128x128xf32> -> vector<128x128xf32>
    %c128 = arith.constant 128 : index
    %c0_6 = arith.constant 0 : index
    %6 = vector.load %arg2[%c128, %c0_6] : memref<256x128xbf16, #tpu.memory_space<vmem>>, vector<128x128xbf16>
    %cst_7 = arith.constant dense<0.000000e+00> : vector<128x128xf32>
    %7 = tpu.matmul %1, %6, %cst_7 {dimension_numbers = #tpu.dot_dimension_numbers<[1], [0], [0], [1], [0, 0, 1, 1], [], []>} : vector<128x128xbf16>, vector<128x128xbf16>, vector<128x128xf32> -> vector<128x128xf32>
    %8 = arith.addf %5, %7 : vector<128x128xf32>
    %c0_8 = arith.constant 0 : index
    %c0_9 = arith.constant 0 : index
    %9 = vector.load %arg3[%c0_8, %c0_9] : memref<1x128xf32, #tpu.memory_space<vmem>>, vector<1x128xf32>
    %10 = vector.broadcast %9 : vector<1x128xf32> to vector<128x128xf32>
    %11 = arith.addf %8, %10 : vector<128x128xf32>
    %cst_10 = arith.constant 0.000000e+00 : f32
    %12 = vector.broadcast %cst_10 : f32 to vector<128x128xf32>
    %13 = arith.maximumf %11, %12 : vector<128x128xf32>
    %14 = arith.truncf %13 : vector<128x128xf32> to vector<128x128xbf16>
    %cst_11 = arith.constant dense<0.000000e+00> : vector<128x128xf32>
    %15 = tpu.matmul %0, %14, %cst_11 {dimension_numbers = #tpu.dot_dimension_numbers<[1], [0], [0], [1], [0, 0, 1, 1], [], []>} : vector<128x128xbf16>, vector<128x128xbf16>, vector<128x128xf32> -> vector<128x128xf32>
    %16 = arith.truncf %15 : vector<128x128xf32> to vector<128x128xbf16>
    %c0_12 = arith.constant 0 : index
    %c0_13 = arith.constant 0 : index
    %17 = vector.load %arg4[%c0_12, %c0_13] : memref<256x128xbf16, #tpu.memory_space<vmem>>, vector<128x128xbf16>
    %cst_14 = arith.constant dense<0.000000e+00> : vector<128x128xf32>
    %18 = tpu.matmul %16, %17, %cst_14 {dimension_numbers = #tpu.dot_dimension_numbers<[1], [0], [0], [1], [0, 0, 1, 1], [], []>} : vector<128x128xbf16>, vector<128x128xbf16>, vector<128x128xf32> -> vector<128x128xf32>
    %c128_15 = arith.constant 128 : index
    %c0_16 = arith.constant 0 : index
    %19 = vector.load %arg4[%c128_15, %c0_16] : memref<256x128xbf16, #tpu.memory_space<vmem>>, vector<128x128xbf16>
    %cst_17 = arith.constant dense<0.000000e+00> : vector<128x128xf32>
    %20 = tpu.matmul %14, %19, %cst_17 {dimension_numbers = #tpu.dot_dimension_numbers<[1], [0], [0], [1], [0, 0, 1, 1], [], []>} : vector<128x128xbf16>, vector<128x128xbf16>, vector<128x128xf32> -> vector<128x128xf32>
    %21 = arith.addf %18, %20 : vector<128x128xf32>
    %c0_18 = arith.constant 0 : index
    %c0_19 = arith.constant 0 : index
    %22 = vector.load %arg5[%c0_18, %c0_19] : memref<1x128xf32, #tpu.memory_space<vmem>>, vector<1x128xf32>
    %23 = vector.broadcast %22 : vector<1x128xf32> to vector<128x128xf32>
    %24 = arith.addf %21, %23 : vector<128x128xf32>
    %cst_20 = arith.constant 0.000000e+00 : f32
    %25 = vector.broadcast %cst_20 : f32 to vector<128x128xf32>
    %26 = arith.maximumf %24, %25 : vector<128x128xf32>
    %27 = arith.truncf %26 : vector<128x128xf32> to vector<128x128xbf16>
    %cst_21 = arith.constant dense<0.000000e+00> : vector<128x128xf32>
    %28 = tpu.matmul %0, %27, %cst_21 {dimension_numbers = #tpu.dot_dimension_numbers<[1], [0], [0], [1], [0, 0, 1, 1], [], []>} : vector<128x128xbf16>, vector<128x128xbf16>, vector<128x128xf32> -> vector<128x128xf32>
    %29 = arith.truncf %28 : vector<128x128xf32> to vector<128x128xbf16>
    %c0_22 = arith.constant 0 : index
    %c0_23 = arith.constant 0 : index
    %30 = vector.load %arg6[%c0_22, %c0_23] : memref<256x128xbf16, #tpu.memory_space<vmem>>, vector<128x128xbf16>
    %cst_24 = arith.constant dense<0.000000e+00> : vector<128x128xf32>
    %31 = tpu.matmul %29, %30, %cst_24 {dimension_numbers = #tpu.dot_dimension_numbers<[1], [0], [0], [1], [0, 0, 1, 1], [], []>} : vector<128x128xbf16>, vector<128x128xbf16>, vector<128x128xf32> -> vector<128x128xf32>
    %c128_25 = arith.constant 128 : index
    %c0_26 = arith.constant 0 : index
    %32 = vector.load %arg6[%c128_25, %c0_26] : memref<256x128xbf16, #tpu.memory_space<vmem>>, vector<128x128xbf16>
    %cst_27 = arith.constant dense<0.000000e+00> : vector<128x128xf32>
    %33 = tpu.matmul %27, %32, %cst_27 {dimension_numbers = #tpu.dot_dimension_numbers<[1], [0], [0], [1], [0, 0, 1, 1], [], []>} : vector<128x128xbf16>, vector<128x128xbf16>, vector<128x128xf32> -> vector<128x128xf32>
    %34 = arith.addf %31, %33 : vector<128x128xf32>
    %c0_28 = arith.constant 0 : index
    %c0_29 = arith.constant 0 : index
    %35 = vector.load %arg7[%c0_28, %c0_29] : memref<1x128xf32, #tpu.memory_space<vmem>>, vector<1x128xf32>
    %36 = vector.broadcast %35 : vector<1x128xf32> to vector<128x128xf32>
    %37 = arith.addf %34, %36 : vector<128x128xf32>
    %38 = arith.truncf %37 : vector<128x128xf32> to vector<128x128xbf16>
    %c0_30 = arith.constant 0 : index
    %c0_31 = arith.constant 0 : index
    %39 = vector.load %arg8[%c0_30, %c0_31] : memref<128x128xbf16, #tpu.memory_space<vmem>>, vector<128x128xbf16>
    tpu.vector_store %arg8[%c0_30, %c0_31], %38 {strides = array<i32>} : memref<128x128xbf16, #tpu.memory_space<vmem>>, vector<128x128xbf16>,
    return
  }
}

</mosaic_0001>

<llo_original>
// kernel: tpu_custom_call.1
$region0: #{tpu_custom_call.1}
  #allocation0 [shape = 'u32[]', space=smem, size = 0x4, offset = 0x4, fixed_abs, tag = 'smem constant byte address 0x4 - core index']
  #allocation1 [shape = 'u32[144,128]{1,0:T(1,128)}', space=vmem, size = 0x12000, scoped, tag = 'internal scratch']
  %s0 = inlined_call_operand.hbm [shape: bf16[128,128], index: 0, kind: input, shape index: {}]
  %s1 = inlined_call_operand.hbm [shape: bf16[128,128], index: 1, kind: input, shape index: {}]
  %s2 = inlined_call_operand.hbm [shape: bf16[256,128], index: 2, kind: input, shape index: {}]
  %s3 = inlined_call_operand.vmem [shape: f32[1,128], index: 3, kind: input, shape index: {}]
  %s4 = inlined_call_operand.hbm [shape: bf16[256,128], index: 4, kind: input, shape index: {}]
  %s5 = inlined_call_operand.vmem [shape: f32[1,128], index: 5, kind: input, shape index: {}]
  %s6 = inlined_call_operand.hbm [shape: bf16[256,128], index: 6, kind: input, shape index: {}]
  %s7 = inlined_call_operand.vmem [shape: f32[1,128], index: 7, kind: input, shape index: {}]
  %s8 = inlined_call_operand.hbm [shape: bf16[128,128], index: 8, kind: output, shape index: {}]
  %s9 = sld [smem:[#allocation0]]
  $region62: #{tpu_custom_call.1} parent=0
    _
  %s11 = ssub.s32 1, %s9
  %s12 = scalar_select 0, %s11, %s9
  $region1: #{tpu_custom_call.1} parent=0
    #allocation2 [shape = 'u8[32768]{0}', space=vmem, size = 0x8000, scoped, tag = 'input window, operand 0, single buffered']
    #allocation3 [shape = 's32[1]{0}', space=sflag, size = 0x4, scoped, tag = 'scoped memory for tpu_custom_call.1']
    #allocation4 [shape = 's32[1]{0}', space=sflag, size = 0x4, scoped, tag = 'scoped memory for tpu_custom_call.1']
    #allocation5 [shape = 'u8[32768]{0}', space=vmem, size = 0x8000, scoped, tag = 'input window, operand 1, single buffered']
    #allocation6 [shape = 's32[1]{0}', space=sflag, size = 0x4, scoped, tag = 'scoped memory for tpu_custom_call.1']
    #allocation7 [shape = 'u8[65536]{0}', space=vmem, size = 0x10000, scoped, tag = 'input window, operand 2, single buffered']
    #allocation8 [shape = 'u8[65536]{0}', space=vmem, size = 0x10000, scoped, tag = 'input window, operand 4, single buffered']
    #allocation9 [shape = 's32[1]{0}', space=sflag, size = 0x4, scoped, tag = 'scoped memory for tpu_custom_call.1']
    #allocation10 [shape = 'u8[65536]{0}', space=vmem, size = 0x10000, scoped, tag = 'input window, operand 6, single buffered']
    #allocation11 [shape = 'u8[32768]{0}', space=vmem, size = 0x8000, scoped, tag = 'output window, operand 0, single buffered']
    %13 = vsyncpa [#allocation3], 0
    %14 = vsyncpa [#allocation6], 0
    %15 = vsyncpa [#allocation9], 0
    %16 = vsyncpa [#allocation4], 0
    // Predicated region
    $region2: #{tpu_custom_call.1} parent=1 // pred_check
      _
    $region3: #{tpu_custom_call.1} parent=1 // pred_check_branch
      %18 = sbr.rel (0) target = $region5
    $region4: #{tpu_custom_call.1} parent=1 // pred_region
      %s20 = ssub.s32 1024, 1024
      %21 = vsyncadd [#allocation3], %s20
      %s22 = sshll.u32 [#allocation2], 4
      %s23 = int_to_ptr.vmem [resolvable:$true] %s22
      %28 = dma.hbm_to_vmem [thread:$0]  %s0, 1024, %s23, [#allocation3], 64, 64, 4
    $region5: #{tpu_custom_call.1} parent=1 // pred_fallthru
      _
    // Predicated region
    $region6: #{tpu_custom_call.1} parent=1 // pred_check
      _
    $region7: #{tpu_custom_call.1} parent=1 // pred_check_branch
      %30 = sbr.rel (0) target = $region9
    $region8: #{tpu_custom_call.1} parent=1 // pred_region
      %s32 = ssub.s32 1024, 1024
      %33 = vsyncadd [#allocation6], %s32
      %s34 = sshll.u32 [#allocation5], 4
      %s35 = int_to_ptr.vmem [resolvable:$true] %s34
      %40 = dma.hbm_to_vmem [thread:$0]  %s1, 1024, %s35, [#allocation6], 64, 64, 4
    $region9: #{tpu_custom_call.1} parent=1 // pred_fallthru
      _
    // Predicated region
    $region10: #{tpu_custom_call.1} parent=1 // pred_check
      _
    $region11: #{tpu_custom_call.1} parent=1 // pred_check_branch
      %42 = sbr.rel (0) target = $region13
    $region12: #{tpu_custom_call.1} parent=1 // pred_region
      %s44 = ssub.s32 2048, 2048
      %45 = vsyncadd [#allocation6], %s44
      %s46 = sshll.u32 [#allocation7], 4
      %s47 = int_to_ptr.vmem [resolvable:$true] %s46
      %52 = dma.hbm_to_vmem [thread:$0]  %s2, 2048, %s47, [#allocation6], 64, 64, 4
    $region13: #{tpu_custom_call.1} parent=1 // pred_fallthru
      _
    // Predicated region
    $region14: #{tpu_custom_call.1} parent=1 // pred_check
      _
    $region15: #{tpu_custom_call.1} parent=1 // pred_check_branch
      %54 = sbr.rel (0) target = $region17
    $region16: #{tpu_custom_call.1} parent=1 // pred_region
      _
    $region17: #{tpu_custom_call.1} parent=1 // pred_fallthru
      _
    // Predicated region
    $region18: #{tpu_custom_call.1} parent=1 // pred_check
      _
    $region19: #{tpu_custom_call.1} parent=1 // pred_check_branch
      %56 = sbr.rel (0) target = $region21
    $region20: #{tpu_custom_call.1} parent=1 // pred_region
      %s58 = ssub.s32 2048, 2048
      %59 = vsyncadd [#allocation9], %s58
      %s60 = sshll.u32 [#allocation8], 4
      %s61 = int_to_ptr.vmem [resolvable:$true] %s60
      %66 = dma.hbm_to_vmem [thread:$0]  %s4, 2048, %s61, [#allocation9], 64, 64, 4
    $region21: #{tpu_custom_call.1} parent=1 // pred_fallthru
      _
    // Predicated region
    $region22: #{tpu_custom_call.1} parent=1 // pred_check
      _
    $region23: #{tpu_custom_call.1} parent=1 // pred_check_branch
      %68 = sbr.rel (0) target = $region25
    $region24: #{tpu_custom_call.1} parent=1 // pred_region
      _
    $region25: #{tpu_custom_call.1} parent=1 // pred_fallthru
      _
    // Predicated region
    $region26: #{tpu_custom_call.1} parent=1 // pred_check
      _
    $region27: #{tpu_custom_call.1} parent=1 // pred_check_branch
      %70 = sbr.rel (0) target = $region29
    $region28: #{tpu_custom_call.1} parent=1 // pred_region
      %s72 = ssub.s32 2048, 2048
      %73 = vsyncadd [#allocation9], %s72
      %s74 = sshll.u32 [#allocation10], 4
      %s75 = int_to_ptr.vmem [resolvable:$true] %s74
      %80 = dma.hbm_to_vmem [thread:$0]  %s6, 2048, %s75, [#allocation9], 64, 64, 4
    $region29: #{tpu_custom_call.1} parent=1 // pred_fallthru
      _
    // Predicated region
    $region30: #{tpu_custom_call.1} parent=1 // pred_check
      _
    $region31: #{tpu_custom_call.1} parent=1 // pred_check_branch
      %82 = sbr.rel (0) target = $region33
    $region32: #{tpu_custom_call.1} parent=1 // pred_region
      _
    $region33: #{tpu_custom_call.1} parent=1 // pred_fallthru
      _
    // Predicated region
    $region34: #{tpu_custom_call.1} parent=1 // pred_check
      _
    $region35: #{tpu_custom_call.1} parent=1 // pred_check_branch
      %84 = sbr.rel (0) target = $region37
    $region36: #{tpu_custom_call.1} parent=1 // pred_region
      %85 = dma.done [#allocation3], 1024
    $region37: #{tpu_custom_call.1} parent=1 // pred_fallthru
      _
    // Predicated region
    $region38: #{tpu_custom_call.1} parent=1 // pred_check
      _
    $region39: #{tpu_custom_call.1} parent=1 // pred_check_branch
      %87 = sbr.rel (0) target = $region41
    $region40: #{tpu_custom_call.1} parent=1 // pred_region
      %88 = dma.done [#allocation6], 1024
    $region41: #{tpu_custom_call.1} parent=1 // pred_fallthru
      _
    // Predicated region
    $region42: #{tpu_custom_call.1} parent=1 // pred_check
      _
    $region43: #{tpu_custom_call.1} parent=1 // pred_check_branch
      %90 = sbr.rel (0) target = $region45
    $region44: #{tpu_custom_call.1} parent=1 // pred_region
      %91 = dma.done [#allocation6], 2048
    $region45: #{tpu_custom_call.1} parent=1 // pred_fallthru
      _
    // Predicated region
    $region46: #{tpu_custom_call.1} parent=1 // pred_check
      _
    $region47: #{tpu_custom_call.1} parent=1 // pred_check_branch
      %93 = sbr.rel (0) target = $region49
    $region48: #{tpu_custom_call.1} parent=1 // pred_region
      %94 = dma.done [#allocation9], 2048
    $region49: #{tpu_custom_call.1} parent=1 // pred_fallthru
      _
    // Predicated region
    $region50: #{tpu_custom_call.1} parent=1 // pred_check
      _
    $region51: #{tpu_custom_call.1} parent=1 // pred_check_branch
      %96 = sbr.rel (0) target = $region53
    $region52: #{tpu_custom_call.1} parent=1 // pred_region
      %97 = dma.done [#allocation9], 2048
    $region53: #{tpu_custom_call.1} parent=1 // pred_fallthru
      _
    %v99 = vld [vmem:[#allocation2] sm:$0xf]
    %v100 = vld [vmem:[#allocation2 + $0x4] sm:$0xf]
    %v101 = vld [vmem:[#allocation2 + $0x8] sm:$0xf]
    %v102 = vld [vmem:[#allocation2 + $0xc] sm:$0xf]
    %v103 = vld [vmem:[#allocation2 + $0x10] sm:$0xf]
    %v104 = vld [vmem:[#allocation2 + $0x14] sm:$0xf]
    %v105 = vld [vmem:[#allocation2 + $0x18] sm:$0xf]
    %v106 = vld [vmem:[#allocation2 + $0x1c] sm:$0xf]
    %v107 = vld [vmem:[#allocation2 + $0x20] sm:$0xf]
    %v108 = vld [vmem:[#allocation2 + $0x24] sm:$0xf]
    %v109 = vld [vmem:[#allocation2 + $0x28] sm:$0xf]
    %v110 = vld [vmem:[#allocation2 + $0x2c] sm:$0xf]
    %v111 = vld [vmem:[#allocation2 + $0x30] sm:$0xf]
    %v112 = vld [vmem:[#allocation2 + $0x34] sm:$0xf]
    %v113 = vld [vmem:[#allocation2 + $0x38] sm:$0xf]
    %v114 = vld [vmem:[#allocation2 + $0x3c] sm:$0xf]
    %v115 = vld [vmem:[#allocation5] sm:$0xf]
    %v116 = vld [vmem:[#allocation5 + $0x4] sm:$0xf]
    %v117 = vld [vmem:[#allocation5 + $0x8] sm:$0xf]
    %v118 = vld [vmem:[#allocation5 + $0xc] sm:$0xf]
    %v119 = vld [vmem:[#allocation5 + $0x10] sm:$0xf]
    %v120 = vld [vmem:[#allocation5 + $0x14] sm:$0xf]
    %v121 = vld [vmem:[#allocation5 + $0x18] sm:$0xf]
    %v122 = vld [vmem:[#allocation5 + $0x1c] sm:$0xf]
    %v123 = vld [vmem:[#allocation5 + $0x20] sm:$0xf]
    %v124 = vld [vmem:[#allocation5 + $0x24] sm:$0xf]
    %v125 = vld [vmem:[#allocation5 + $0x28] sm:$0xf]
    %v126 = vld [vmem:[#allocation5 + $0x2c] sm:$0xf]
    %v127 = vld [vmem:[#allocation5 + $0x30] sm:$0xf]
    %v128 = vld [vmem:[#allocation5 + $0x34] sm:$0xf]
    %v129 = vld [vmem:[#allocation5 + $0x38] sm:$0xf]
    %v130 = vld [vmem:[#allocation5 + $0x3c] sm:$0xf]
    %v147 = vunpack.c.l.b16 %v99
    %v148 = vunpack.c.l.b16 %v100
    %v149 = vunpack.c.l.b16 %v101
    %v150 = vunpack.c.l.b16 %v102
    %v151 = vunpack.c.l.b16 %v103
    %v152 = vunpack.c.l.b16 %v104
    %v153 = vunpack.c.l.b16 %v105
    %v154 = vunpack.c.l.b16 %v106
    %v155 = vunpack.c.l.b16 %v107
    %v156 = vunpack.c.l.b16 %v108
    %v157 = vunpack.c.l.b16 %v109
    %v158 = vunpack.c.l.b16 %v110
    %v159 = vunpack.c.l.b16 %v111
    %v160 = vunpack.c.l.b16 %v112
    %v161 = vunpack.c.l.b16 %v113
    %v162 = vunpack.c.l.b16 %v114
    %v163 = vpack.c.b16 %v148, %v147
    %v164 = vpack.c.b16 %v150, %v149
    %v165 = vpack.c.b16 %v152, %v151
    %v166 = vpack.c.b16 %v154, %v153
    %v167 = vpack.c.b16 %v156, %v155
    %v168 = vpack.c.b16 %v158, %v157
    %v169 = vpack.c.b16 %v160, %v159
    %v170 = vpack.c.b16 %v162, %v161
    %v195 = vunpack.c.l.b16 %v115
    %v196 = vunpack.c.l.b16 %v116
    %v197 = vunpack.c.l.b16 %v117
    %v198 = vunpack.c.l.b16 %v118
    %v199 = vunpack.c.l.b16 %v119
    %v200 = vunpack.c.l.b16 %v120
    %v201 = vunpack.c.l.b16 %v121
    %v202 = vunpack.c.l.b16 %v122
    %v203 = vunpack.c.l.b16 %v123
    %v204 = vunpack.c.l.b16 %v124
    %v205 = vunpack.c.l.b16 %v125
    %v206 = vunpack.c.l.b16 %v126
    %v207 = vunpack.c.l.b16 %v127
    %v208 = vunpack.c.l.b16 %v128
    %v209 = vunpack.c.l.b16 %v129
    %v210 = vunpack.c.l.b16 %v130
    %v211 = vpack.c.b16 %v196, %v195
    %v212 = vpack.c.b16 %v198, %v197
    %v213 = vpack.c.b16 %v200, %v199
    %v214 = vpack.c.b16 %v202, %v201
    %v215 = vpack.c.b16 %v204, %v203
    %v216 = vpack.c.b16 %v206, %v205
    %v217 = vpack.c.b16 %v208, %v207
    %v218 = vpack.c.b16 %v210, %v209
    %227 = vmatprep.subr.bf16.mxu0 0
    %228 = vmatpush1.bf16.msra.mxu0 %v211
    %229 = vmatprep.subr.bf16.mxu0 0
    %230 = vmatpush1.bf16.msra.mxu0 %v212
    %231 = vmatprep.subr.bf16.mxu0 0
    %232 = vmatpush1.bf16.msra.mxu0 %v213
    %233 = vmatprep.subr.bf16.mxu0 0
    %234 = vmatpush1.bf16.msra.mxu0 %v214
    %235 = vmatprep.subr.bf16.mxu0 0
    %236 = vmatpush1.bf16.msra.mxu0 %v215
    %237 = vmatprep.subr.bf16.mxu0 0
    %238 = vmatpush1.bf16.msra.mxu0 %v216
    %239 = vmatprep.subr.bf16.mxu0 0
    %240 = vmatpush1.bf16.msra.mxu0 %v217
    %241 = vmatprep.subr.bf16.mxu0 0
    %242 = vmatpush1.bf16.msra.mxu0 %v218
    %243 = vmatprep.subr.bf16.mxu0 0
    %244 = vmatpush1.bf16.msra.mxu0 0
    %245 = vmatprep.subr.bf16.mxu0 0
    %246 = vmatpush1.bf16.msra.mxu0 0
    %247 = vmatprep.subr.bf16.mxu0 0
    %248 = vmatpush1.bf16.msra.mxu0 0
    %249 = vmatprep.subr.bf16.mxu0 0
    %250 = vmatpush1.bf16.msra.mxu0 0
    %251 = vmatprep.subr.bf16.mxu0 0
    %252 = vmatpush1.bf16.msra.mxu0 0
    %253 = vmatprep.subr.bf16.mxu0 0
    %254 = vmatpush1.bf16.msra.mxu0 0
    %255 = vmatprep.subr.bf16.mxu0 0
    %256 = vmatpush1.bf16.msra.mxu0 0
    %257 = vmatprep.subr.bf16.mxu0 0
    %258 = vmatpush1.bf16.msra.mxu0 0
    %259 = vmatprep.mubr.bf16.mxu0 0
    %260 = vmatmul.mubr.bf16.gmra.mrb[0].mxu0 %v163
    %v261 = vpop.f32.mrb[0].mxu0
    %v262 = vadd.f32 0.0, %v261
    %v263 = vpop.f32.mrb[0].mxu0
    %v264 = vpop.f32.mrb[0].mxu0
    %v265 = vadd.f32 0.0, %v264
    %v266 = vpop.f32.mrb[0].mxu0
    %267 = vmatprep.mubr.bf16.mxu0 0
    %268 = vmatmul.mubr.bf16.gmra.mrb[0].mxu0 %v164
    %v269 = vpop.f32.mrb[0].mxu0
    %v270 = vadd.f32 0.0, %v269
    %v271 = vpop.f32.mrb[0].mxu0
    %v272 = vpop.f32.mrb[0].mxu0
    %v273 = vadd.f32 0.0, %v272
    %v274 = vpop.f32.mrb[0].mxu0
    %275 = vmatprep.mubr.bf16.mxu0 0
    %276 = vmatmul.mubr.bf16.gmra.mrb[0].mxu0 %v165
    %v277 = vpop.f32.mrb[0].mxu0
    %v278 = vadd.f32 0.0, %v277
    %v279 = vpop.f32.mrb[0].mxu0
    %v280 = vpop.f32.mrb[0].mxu0
    %v281 = vadd.f32 0.0, %v280
    %v282 = vpop.f32.mrb[0].mxu0
    %283 = vmatprep.mubr.bf16.mxu0 0
    %284 = vmatmul.mubr.bf16.gmra.mrb[0].mxu0 %v166
    %v285 = vpop.f32.mrb[0].mxu0
    %v286 = vadd.f32 0.0, %v285
    %v287 = vpop.f32.mrb[0].mxu0
    %v288 = vpop.f32.mrb[0].mxu0
    %v289 = vadd.f32 0.0, %v288
    %v290 = vpop.f32.mrb[0].mxu0
    %291 = vmatprep.mubr.bf16.mxu0 0
    %292 = vmatmul.mubr.bf16.gmra.mrb[0].mxu0 %v167
    %v293 = vpop.f32.mrb[0].mxu0
    %v294 = vadd.f32 0.0, %v293
    %v295 = vpop.f32.mrb[0].mxu0
    %v296 = vpop.f32.mrb[0].mxu0
    %v297 = vadd.f32 0.0, %v296
    %v298 = vpop.f32.mrb[0].mxu0
    %299 = vmatprep.mubr.bf16.mxu0 0
    %300 = vmatmul.mubr.bf16.gmra.mrb[0].mxu0 %v168
    %v301 = vpop.f32.mrb[0].mxu0
    %v302 = vadd.f32 0.0, %v301
    %v303 = vpop.f32.mrb[0].mxu0
    %v304 = vpop.f32.mrb[0].mxu0
    %v305 = vadd.f32 0.0, %v304
    %v306 = vpop.f32.mrb[0].mxu0
    %307 = vmatprep.mubr.bf16.mxu0 0
    %308 = vmatmul.mubr.bf16.gmra.mrb[0].mxu0 %v169
    %v309 = vpop.f32.mrb[0].mxu0
    %v310 = vadd.f32 0.0, %v309
    %v311 = vpop.f32.mrb[0].mxu0
    %v312 = vpop.f32.mrb[0].mxu0
    %v313 = vadd.f32 0.0, %v312
    %v314 = vpop.f32.mrb[0].mxu0
    %315 = vmatprep.mubr.bf16.mxu0 0
    %316 = vmatmul.mubr.bf16.gmra.mrb[0].mxu0 %v170
    %v317 = vpop.f32.mrb[0].mxu0
    %v318 = vadd.f32 0.0, %v317
    %v319 = vpop.f32.mrb[0].mxu0
    %v320 = vpop.f32.mrb[0].mxu0
    %v321 = vadd.f32 0.0, %v320
    %v322 = vpop.f32.mrb[0].mxu0
    %323 = vdwg.mxu0
    %v324 = vpack.c.bf16 %v265, %v262
    %v325 = vpack.c.bf16 %v273, %v270
    %v326 = vpack.c.bf16 %v281, %v278
    %v327 = vpack.c.bf16 %v289, %v286
    %v328 = vpack.c.bf16 %v297, %v294
    %v329 = vpack.c.bf16 %v305, %v302
    %v330 = vpack.c.bf16 %v313, %v310
    %v331 = vpack.c.bf16 %v321, %v318
    %v332 = vld [vmem:[#allocation7] sm:$0xf]
    %v333 = vld [vmem:[#allocation7 + $0x4] sm:$0xf]
    %v334 = vld [vmem:[#allocation7 + $0x8] sm:$0xf]
    %v335 = vld [vmem:[#allocation7 + $0xc] sm:$0xf]
    %v336 = vld [vmem:[#allocation7 + $0x10] sm:$0xf]
    %v337 = vld [vmem:[#allocation7 + $0x14] sm:$0xf]
    %v338 = vld [vmem:[#allocation7 + $0x18] sm:$0xf]
    %v339 = vld [vmem:[#allocation7 + $0x1c] sm:$0xf]
    %v340 = vld [vmem:[#allocation7 + $0x20] sm:$0xf]
    %v341 = vld [vmem:[#allocation7 + $0x24] sm:$0xf]
    %v342 = vld [vmem:[#allocation7 + $0x28] sm:$0xf]
    %v343 = vld [vmem:[#allocation7 + $0x2c] sm:$0xf]
    %v344 = vld [vmem:[#allocation7 + $0x30] sm:$0xf]
    %v345 = vld [vmem:[#allocation7 + $0x34] sm:$0xf]
    %v346 = vld [vmem:[#allocation7 + $0x38] sm:$0xf]
    %v347 = vld [vmem:[#allocation7 + $0x3c] sm:$0xf]
    %v348 = vld [vmem:[#allocation7 + $0x40] sm:$0xf]
    %v349 = vld [vmem:[#allocation7 + $0x44] sm:$0xf]
    %v350 = vld [vmem:[#allocation7 + $0x48] sm:$0xf]
    %v351 = vld [vmem:[#allocation7 + $0x4c] sm:$0xf]
    %v352 = vld [vmem:[#allocation7 + $0x50] sm:$0xf]
    %v353 = vld [vmem:[#allocation7 + $0x54] sm:$0xf]
    %v354 = vld [vmem:[#allocation7 + $0x58] sm:$0xf]
    %v355 = vld [vmem:[#allocation7 + $0x5c] sm:$0xf]
    %v356 = vld [vmem:[#allocation7 + $0x60] sm:$0xf]
    %v357 = vld [vmem:[#allocation7 + $0x64] sm:$0xf]
    %v358 = vld [vmem:[#allocation7 + $0x68] sm:$0xf]
    %v359 = vld [vmem:[#allocation7 + $0x6c] sm:$0xf]
    %v360 = vld [vmem:[#allocation7 + $0x70] sm:$0xf]
    %v361 = vld [vmem:[#allocation7 + $0x74] sm:$0xf]
    %v362 = vld [vmem:[#allocation7 + $0x78] sm:$0xf]
    %v363 = vld [vmem:[#allocation7 + $0x7c] sm:$0xf]
    %v380 = vunpack.c.l.b16 %v348
    %v381 = vunpack.c.l.b16 %v349
    %v382 = vunpack.c.l.b16 %v350
    %v383 = vunpack.c.l.b16 %v351
    %v384 = vunpack.c.l.b16 %v352
    %v385 = vunpack.c.l.b16 %v353
    %v386 = vunpack.c.l.b16 %v354
    %v387 = vunpack.c.l.b16 %v355
    %v388 = vunpack.c.l.b16 %v356
    %v389 = vunpack.c.l.b16 %v357
    %v390 = vunpack.c.l.b16 %v358
    %v391 = vunpack.c.l.b16 %v359
    %v392 = vunpack.c.l.b16 %v360
    %v393 = vunpack.c.l.b16 %v361
    %v394 = vunpack.c.l.b16 %v362
    %v395 = vunpack.c.l.b16 %v363
    %v396 = vpack.c.b16 %v381, %v380
    %v397 = vpack.c.b16 %v383, %v382
    %v398 = vpack.c.b16 %v385, %v384
    %v399 = vpack.c.b16 %v387, %v386
    %v400 = vpack.c.b16 %v389, %v388
    %v401 = vpack.c.b16 %v391, %v390
    %v402 = vpack.c.b16 %v393, %v392
    %v403 = vpack.c.b16 %v395, %v394
    %412 = vmatprep.subr.bf16.mxu0 0
    %413 = vmatpush1.bf16.msra.mxu0 %v396
    %414 = vmatprep.subr.bf16.mxu0 0
    %415 = vmatpush1.bf16.msra.mxu0 %v397
    %416 = vmatprep.subr.bf16.mxu0 0
    %417 = vmatpush1.bf16.msra.mxu0 %v398
    %418 = vmatprep.subr.bf16.mxu0 0
    %419 = vmatpush1.bf16.msra.mxu0 %v399
    %420 = vmatprep.subr.bf16.mxu0 0
    %421 = vmatpush1.bf16.msra.mxu0 %v400
    %422 = vmatprep.subr.bf16.mxu0 0
    %423 = vmatpush1.bf16.msra.mxu0 %v401
    %424 = vmatprep.subr.bf16.mxu0 0
    %425 = vmatpush1.bf16.msra.mxu0 %v402
    %426 = vmatprep.subr.bf16.mxu0 0
    %427 = vmatpush1.bf16.msra.mxu0 %v403
    %428 = vmatprep.subr.bf16.mxu0 0
    %429 = vmatpush1.bf16.msra.mxu0 0
    %430 = vmatprep.subr.bf16.mxu0 0
    %431 = vmatpush1.bf16.msra.mxu0 0
    %432 = vmatprep.subr.bf16.mxu0 0
    %433 = vmatpush1.bf16.msra.mxu0 0
    %434 = vmatprep.subr.bf16.mxu0 0
    %435 = vmatpush1.bf16.msra.mxu0 0
    %436 = vmatprep.subr.bf16.mxu0 0
    %437 = vmatpush1.bf16.msra.mxu0 0
    %438 = vmatprep.subr.bf16.mxu0 0
    %439 = vmatpush1.bf16.msra.mxu0 0
    %440 = vmatprep.subr.bf16.mxu0 0
    %441 = vmatpush1.bf16.msra.mxu0 0
    %442 = vmatprep.subr.bf16.mxu0 0
    %443 = vmatpush1.bf16.msra.mxu0 0
    %444 = vmatprep.mubr.bf16.mxu0 0
    %445 = vmatmul.mubr.bf16.gmra.mrb[0].mxu0 %v211
    %v446 = vpop.f32.mrb[0].mxu0
    %v447 = vadd.f32 0.0, %v446
    %v448 = vpop.f32.mrb[0].mxu0
    %v449 = vpop.f32.mrb[0].mxu0
    %v450 = vadd.f32 0.0, %v449
    %v451 = vpop.f32.mrb[0].mxu0
    %452 = vmatprep.mubr.bf16.mxu0 0
    %453 = vmatmul.mubr.bf16.gmra.mrb[0].mxu0 %v212
    %v454 = vpop.f32.mrb[0].mxu0
    %v455 = vadd.f32 0.0, %v454
    %v456 = vpop.f32.mrb[0].mxu0
    %v457 = vpop.f32.mrb[0].mxu0
    %v458 = vadd.f32 0.0, %v457
    %v459 = vpop.f32.mrb[0].mxu0
    %460 = vmatprep.mubr.bf16.mxu0 0
    %461 = vmatmul.mubr.bf16.gmra.mrb[0].mxu0 %v213
    %v462 = vpop.f32.mrb[0].mxu0
    %v463 = vadd.f32 0.0, %v462
    %v464 = vpop.f32.mrb[0].mxu0
    %v465 = vpop.f32.mrb[0].mxu0
    %v466 = vadd.f32 0.0, %v465
    %v467 = vpop.f32.mrb[0].mxu0
    %468 = vmatprep.mubr.bf16.mxu0 0
    %469 = vmatmul.mubr.bf16.gmra.mrb[0].mxu0 %v214
    %v470 = vpop.f32.mrb[0].mxu0
    %v471 = vadd.f32 0.0, %v470
    %v472 = vpop.f32.mrb[0].mxu0
    %v473 = vpop.f32.mrb[0].mxu0
    %v474 = vadd.f32 0.0, %v473
    %v475 = vpop.f32.mrb[0].mxu0
    %476 = vmatprep.mubr.bf16.mxu0 0
    %477 = vmatmul.mubr.bf16.gmra.mrb[0].mxu0 %v215
    %v478 = vpop.f32.mrb[0].mxu0
    %v479 = vadd.f32 0.0, %v478
    %v480 = vpop.f32.mrb[0].mxu0
    %v481 = vpop.f32.mrb[0].mxu0
    %v482 = vadd.f32 0.0, %v481
    %v483 = vpop.f32.mrb[0].mxu0
    %484 = vmatprep.mubr.bf16.mxu0 0
    %485 = vmatmul.mubr.bf16.gmra.mrb[0].mxu0 %v216
    %v486 = vpop.f32.mrb[0].mxu0
    %v487 = vadd.f32 0.0, %v486
    %v488 = vpop.f32.mrb[0].mxu0
    %v489 = vpop.f32.mrb[0].mxu0
    %v490 = vadd.f32 0.0, %v489
    %v491 = vpop.f32.mrb[0].mxu0
    %492 = vmatprep.mubr.bf16.mxu0 0
    %493 = vmatmul.mubr.bf16.gmra.mrb[0].mxu0 %v217
    %v494 = vpop.f32.mrb[0].mxu0
    %v495 = vadd.f32 0.0, %v494
    %v496 = vpop.f32.mrb[0].mxu0
    %v497 = vpop.f32.mrb[0].mxu0
    %v498 = vadd.f32 0.0, %v497
    %v499 = vpop.f32.mrb[0].mxu0
    %500 = vmatprep.mubr.bf16.mxu0 0
    %501 = vmatmul.mubr.bf16.gmra.mrb[0].mxu0 %v218
    %v502 = vpop.f32.mrb[0].mxu0
    %v503 = vadd.f32 0.0, %v502
    %v504 = vpop.f32.mrb[0].mxu0
    %v505 = vpop.f32.mrb[0].mxu0
    %v506 = vadd.f32 0.0, %v505
    %v507 = vpop.f32.mrb[0].mxu0
    %508 = vdwg.mxu0
    %v525 = vunpack.c.l.b16 %v332
    %v526 = vunpack.c.l.b16 %v333
    %v527 = vunpack.c.l.b16 %v334
    %v528 = vunpack.c.l.b16 %v335
    %v529 = vunpack.c.l.b16 %v336
    %v530 = vunpack.c.l.b16 %v337
    %v531 = vunpack.c.l.b16 %v338
    %v532 = vunpack.c.l.b16 %v339
    %v533 = vunpack.c.l.b16 %v340
    %v534 = vunpack.c.l.b16 %v341
    %v535 = vunpack.c.l.b16 %v342
    %v536 = vunpack.c.l.b16 %v343
    %v537 = vunpack.c.l.b16 %v344
    %v538 = vunpack.c.l.b16 %v345
    %v539 = vunpack.c.l.b16 %v346
    %v540 = vunpack.c.l.b16 %v347
    %v541 = vpack.c.b16 %v526, %v525
    %v542 = vpack.c.b16 %v528, %v527
    %v543 = vpack.c.b16 %v530, %v529
    %v544 = vpack.c.b16 %v532, %v531
    %v545 = vpack.c.b16 %v534, %v533
    %v546 = vpack.c.b16 %v536, %v535
    %v547 = vpack.c.b16 %v538, %v537
    %v548 = vpack.c.b16 %v540, %v539
    %557 = vmatprep.subr.bf16.mxu0 0
    %558 = vmatpush1.bf16.msra.mxu0 %v541
    %559 = vmatprep.subr.bf16.mxu0 0
    %560 = vmatpush1.bf16.msra.mxu0 %v542
    %561 = vmatprep.subr.bf16.mxu0 0
    %562 = vmatpush1.bf16.msra.mxu0 %v543
    %563 = vmatprep.subr.bf16.mxu0 0
    %564 = vmatpush1.bf16.msra.mxu0 %v544
    %565 = vmatprep.subr.bf16.mxu0 0
    %566 = vmatpush1.bf16.msra.mxu0 %v545
    %567 = vmatprep.subr.bf16.mxu0 0
    %568 = vmatpush1.bf16.msra.mxu0 %v546
    %569 = vmatprep.subr.bf16.mxu0 0
    %570 = vmatpush1.bf16.msra.mxu0 %v547
    %571 = vmatprep.subr.bf16.mxu0 0
    %572 = vmatpush1.bf16.msra.mxu0 %v548
    %573 = vmatprep.subr.bf16.mxu0 0
    %574 = vmatpush1.bf16.msra.mxu0 0
    %575 = vmatprep.subr.bf16.mxu0 0
    %576 = vmatpush1.bf16.msra.mxu0 0
    %577 = vmatprep.subr.bf16.mxu0 0
    %578 = vmatpush1.bf16.msra.mxu0 0
    %579 = vmatprep.subr.bf16.mxu0 0
    %580 = vmatpush1.bf16.msra.mxu0 0
    %581 = vmatprep.subr.bf16.mxu0 0
    %582 = vmatpush1.bf16.msra.mxu0 0
    %583 = vmatprep.subr.bf16.mxu0 0
    %584 = vmatpush1.bf16.msra.mxu0 0
    %585 = vmatprep.subr.bf16.mxu0 0
    %586 = vmatpush1.bf16.msra.mxu0 0
    %587 = vmatprep.subr.bf16.mxu0 0
    %588 = vmatpush1.bf16.msra.mxu0 0
    %589 = vmatprep.mubr.bf16.mxu0 0
    %590 = vmatmul.mubr.bf16.gmra.mrb[0].mxu0 %v324
    %v591 = vpop.f32.mrb[0].mxu0
    %v592 = vadd.f32 %v447, %v591
    %v593 = vpop.f32.mrb[0].mxu0
    %v594 = vpop.f32.mrb[0].mxu0
    %v595 = vadd.f32 %v450, %v594
    %v596 = vpop.f32.mrb[0].mxu0
    %597 = vmatprep.mubr.bf16.mxu0 0
    %598 = vmatmul.mubr.bf16.gmra.mrb[0].mxu0 %v325
    %v599 = vpop.f32.mrb[0].mxu0
    %v600 = vadd.f32 %v455, %v599
    %v601 = vpop.f32.mrb[0].mxu0
    %v602 = vpop.f32.mrb[0].mxu0
    %v603 = vadd.f32 %v458, %v602
    %v604 = vpop.f32.mrb[0].mxu0
    %605 = vmatprep.mubr.bf16.mxu0 0
    %606 = vmatmul.mubr.bf16.gmra.mrb[0].mxu0 %v326
    %v607 = vpop.f32.mrb[0].mxu0
    %v608 = vadd.f32 %v463, %v607
    %v609 = vpop.f32.mrb[0].mxu0
    %v610 = vpop.f32.mrb[0].mxu0
    %v611 = vadd.f32 %v466, %v610
    %v612 = vpop.f32.mrb[0].mxu0
    %613 = vmatprep.mubr.bf16.mxu0 0
    %614 = vmatmul.mubr.bf16.gmra.mrb[0].mxu0 %v327
    %v615 = vpop.f32.mrb[0].mxu0
    %v616 = vadd.f32 %v471, %v615
    %v617 = vpop.f32.mrb[0].mxu0
    %v618 = vpop.f32.mrb[0].mxu0
    %v619 = vadd.f32 %v474, %v618
    %v620 = vpop.f32.mrb[0].mxu0
    %621 = vmatprep.mubr.bf16.mxu0 0
    %622 = vmatmul.mubr.bf16.gmra.mrb[0].mxu0 %v328
    %v623 = vpop.f32.mrb[0].mxu0
    %v624 = vadd.f32 %v479, %v623
    %v625 = vpop.f32.mrb[0].mxu0
    %v626 = vpop.f32.mrb[0].mxu0
    %v627 = vadd.f32 %v482, %v626
    %v628 = vpop.f32.mrb[0].mxu0
    %629 = vmatprep.mubr.bf16.mxu0 0
    %630 = vmatmul.mubr.bf16.gmra.mrb[0].mxu0 %v329
    %v631 = vpop.f32.mrb[0].mxu0
    %v632 = vadd.f32 %v487, %v631
    %v633 = vpop.f32.mrb[0].mxu0
    %v634 = vpop.f32.mrb[0].mxu0
    %v635 = vadd.f32 %v490, %v634
    %v636 = vpop.f32.mrb[0].mxu0
    %637 = vmatprep.mubr.bf16.mxu0 0
    %638 = vmatmul.mubr.bf16.gmra.mrb[0].mxu0 %v330
    %v639 = vpop.f32.mrb[0].mxu0
    %v640 = vadd.f32 %v495, %v639
    %v641 = vpop.f32.mrb[0].mxu0
    %v642 = vpop.f32.mrb[0].mxu0
    %v643 = vadd.f32 %v498, %v642
    %v644 = vpop.f32.mrb[0].mxu0
    %645 = vmatprep.mubr.bf16.mxu0 0
    %646 = vmatmul.mubr.bf16.gmra.mrb[0].mxu0 %v331
    %v647 = vpop.f32.mrb[0].mxu0
    %v648 = vadd.f32 %v503, %v647
    %v649 = vpop.f32.mrb[0].mxu0
    %v650 = vpop.f32.mrb[0].mxu0
    %v651 = vadd.f32 %v506, %v650
    %v652 = vpop.f32.mrb[0].mxu0
    %653 = vdwg.mxu0
    %v654 = vld [vmem:[%s3] sm:$0x1]
    %v656 = vlaneseq
    %v657 = vshrl.u32 %v656, 7
    %v658 = vsub.s32 0, %v657
    %v659 = vrot.slane %v654, %v658
    %v661 = vadd.f32 %v592, %v659
    %v662 = vadd.f32 %v595, %v659
    %v663 = vadd.f32 %v600, %v659
    %v664 = vadd.f32 %v603, %v659
    %v665 = vadd.f32 %v608, %v659
    %v666 = vadd.f32 %v611, %v659
    %v667 = vadd.f32 %v616, %v659
    %v668 = vadd.f32 %v619, %v659
    %v669 = vadd.f32 %v624, %v659
    %v670 = vadd.f32 %v627, %v659
    %v671 = vadd.f32 %v632, %v659
    %v672 = vadd.f32 %v635, %v659
    %v673 = vadd.f32 %v640, %v659
    %v674 = vadd.f32 %v643, %v659
    %v675 = vadd.f32 %v648, %v659
    %v676 = vadd.f32 %v651, %v659
    %v677 = vmax.f32 %v661, 0.0
    %v678 = vmax.f32 %v662, 0.0
    %v679 = vmax.f32 %v663, 0.0
    %v680 = vmax.f32 %v664, 0.0
    %v681 = vmax.f32 %v665, 0.0
    %v682 = vmax.f32 %v666, 0.0
    %v683 = vmax.f32 %v667, 0.0
    %v684 = vmax.f32 %v668, 0.0
    %v685 = vmax.f32 %v669, 0.0
    %v686 = vmax.f32 %v670, 0.0
    %v687 = vmax.f32 %v671, 0.0
    %v688 = vmax.f32 %v672, 0.0
    %v689 = vmax.f32 %v673, 0.0
    %v690 = vmax.f32 %v674, 0.0
    %v691 = vmax.f32 %v675, 0.0
    %v692 = vmax.f32 %v676, 0.0
    %v693 = vpack.c.bf16 %v678, %v677
    %v694 = vpack.c.bf16 %v680, %v679
    %v695 = vpack.c.bf16 %v682, %v681
    %v696 = vpack.c.bf16 %v684, %v683
    %v697 = vpack.c.bf16 %v686, %v685
    %v698 = vpack.c.bf16 %v688, %v687
    %v699 = vpack.c.bf16 %v690, %v689
    %v700 = vpack.c.bf16 %v692, %v691
    %701 = vmatprep.subr.bf16.mxu0 0
    %702 = vmatpush1.bf16.msra.mxu0 %v693
    %703 = vmatprep.subr.bf16.mxu0 0
    %704 = vmatpush1.bf16.msra.mxu0 %v694
    %705 = vmatprep.subr.bf16.mxu0 0
    %706 = vmatpush1.bf16.msra.mxu0 %v695
    %707 = vmatprep.subr.bf16.mxu0 0
    %708 = vmatpush1.bf16.msra.mxu0 %v696
    %709 = vmatprep.subr.bf16.mxu0 0
    %710 = vmatpush1.bf16.msra.mxu0 %v697
    %711 = vmatprep.subr.bf16.mxu0 0
    %712 = vmatpush1.bf16.msra.mxu0 %v698
    %713 = vmatprep.subr.bf16.mxu0 0
    %714 = vmatpush1.bf16.msra.mxu0 %v699
    %715 = vmatprep.subr.bf16.mxu0 0
    %716 = vmatpush1.bf16.msra.mxu0 %v700
    %717 = vmatprep.subr.bf16.mxu0 0
    %718 = vmatpush1.bf16.msra.mxu0 0
    %719 = vmatprep.subr.bf16.mxu0 0
    %720 = vmatpush1.bf16.msra.mxu0 0
    %721 = vmatprep.subr.bf16.mxu0 0
    %722 = vmatpush1.bf16.msra.mxu0 0
    %723 = vmatprep.subr.bf16.mxu0 0
    %724 = vmatpush1.bf16.msra.mxu0 0
    %725 = vmatprep.subr.bf16.mxu0 0
    %726 = vmatpush1.bf16.msra.mxu0 0
    %727 = vmatprep.subr.bf16.mxu0 0
    %728 = vmatpush1.bf16.msra.mxu0 0
    %729 = vmatprep.subr.bf16.mxu0 0
    %730 = vmatpush1.bf16.msra.mxu0 0
    %731 = vmatprep.subr.bf16.mxu0 0
    %732 = vmatpush1.bf16.msra.mxu0 0
    %733 = vmatprep.mubr.bf16.mxu0 0
    %734 = vmatmul.mubr.bf16.gmra.mrb[0].mxu0 %v163
    %v735 = vpop.f32.mrb[0].mxu0
    %v736 = vadd.f32 0.0, %v735
    %v737 = vpop.f32.mrb[0].mxu0
    %v738 = vpop.f32.mrb[0].mxu0
    %v739 = vadd.f32 0.0, %v738
    %v740 = vpop.f32.mrb[0].mxu0
    %741 = vmatprep.mubr.bf16.mxu0 0
    %742 = vmatmul.mubr.bf16.gmra.mrb[0].mxu0 %v164
    %v743 = vpop.f32.mrb[0].mxu0
    %v744 = vadd.f32 0.0, %v743
    %v745 = vpop.f32.mrb[0].mxu0
    %v746 = vpop.f32.mrb[0].mxu0
    %v747 = vadd.f32 0.0, %v746
    %v748 = vpop.f32.mrb[0].mxu0
    %749 = vmatprep.mubr.bf16.mxu0 0
    %750 = vmatmul.mubr.bf16.gmra.mrb[0].mxu0 %v165
    %v751 = vpop.f32.mrb[0].mxu0
    %v752 = vadd.f32 0.0, %v751
    %v753 = vpop.f32.mrb[0].mxu0
    %v754 = vpop.f32.mrb[0].mxu0
    %v755 = vadd.f32 0.0, %v754
    %v756 = vpop.f32.mrb[0].mxu0
    %757 = vmatprep.mubr.bf16.mxu0 0
    %758 = vmatmul.mubr.bf16.gmra.mrb[0].mxu0 %v166
    %v759 = vpop.f32.mrb[0].mxu0
    %v760 = vadd.f32 0.0, %v759
    %v761 = vpop.f32.mrb[0].mxu0
    %v762 = vpop.f32.mrb[0].mxu0
    %v763 = vadd.f32 0.0, %v762
    %v764 = vpop.f32.mrb[0].mxu0
    %765 = vmatprep.mubr.bf16.mxu0 0
    %766 = vmatmul.mubr.bf16.gmra.mrb[0].mxu0 %v167
    %v767 = vpop.f32.mrb[0].mxu0
    %v768 = vadd.f32 0.0, %v767
    %v769 = vpop.f32.mrb[0].mxu0
    %v770 = vpop.f32.mrb[0].mxu0
    %v771 = vadd.f32 0.0, %v770
    %v772 = vpop.f32.mrb[0].mxu0
    %773 = vmatprep.mubr.bf16.mxu0 0
    %774 = vmatmul.mubr.bf16.gmra.mrb[0].mxu0 %v168
    %v775 = vpop.f32.mrb[0].mxu0
    %v776 = vadd.f32 0.0, %v775
    %v777 = vpop.f32.mrb[0].mxu0
    %v778 = vpop.f32.mrb[0].mxu0
    %v779 = vadd.f32 0.0, %v778
    %v780 = vpop.f32.mrb[0].mxu0
    %781 = vmatprep.mubr.bf16.mxu0 0
    %782 = vmatmul.mubr.bf16.gmra.mrb[0].mxu0 %v169
    %v783 = vpop.f32.mrb[0].mxu0
    %v784 = vadd.f32 0.0, %v783
    %v785 = vpop.f32.mrb[0].mxu0
    %v786 = vpop.f32.mrb[0].mxu0
    %v787 = vadd.f32 0.0, %v786
    %v788 = vpop.f32.mrb[0].mxu0
    %789 = vmatprep.mubr.bf16.mxu0 0
    %790 = vmatmul.mubr.bf16.gmra.mrb[0].mxu0 %v170
    %v791 = vpop.f32.mrb[0].mxu0
    %v792 = vadd.f32 0.0, %v791
    %v793 = vpop.f32.mrb[0].mxu0
    %v794 = vpop.f32.mrb[0].mxu0
    %v795 = vadd.f32 0.0, %v794
    %v796 = vpop.f32.mrb[0].mxu0
    %797 = vdwg.mxu0
    %v798 = vpack.c.bf16 %v739, %v736
    %v799 = vpack.c.bf16 %v747, %v744
    %v800 = vpack.c.bf16 %v755, %v752
    %v801 = vpack.c.bf16 %v763, %v760
    %v802 = vpack.c.bf16 %v771, %v768
    %v803 = vpack.c.bf16 %v779, %v776
    %v804 = vpack.c.bf16 %v787, %v784
    %v805 = vpack.c.bf16 %v795, %v792
    %v806 = vld [vmem:[#allocation8] sm:$0xf]
    %v807 = vld [vmem:[#allocation8 + $0x4] sm:$0xf]
    %v808 = vld [vmem:[#allocation8 + $0x8] sm:$0xf]
    %v809 = vld [vmem:[#allocation8 + $0xc] sm:$0xf]
    %v810 = vld [vmem:[#allocation8 + $0x10] sm:$0xf]
    %v811 = vld [vmem:[#allocation8 + $0x14] sm:$0xf]
    %v812 = vld [vmem:[#allocation8 + $0x18] sm:$0xf]
    %v813 = vld [vmem:[#allocation8 + $0x1c] sm:$0xf]
    %v814 = vld [vmem:[#allocation8 + $0x20] sm:$0xf]
    %v815 = vld [vmem:[#allocation8 + $0x24] sm:$0xf]
    %v816 = vld [vmem:[#allocation8 + $0x28] sm:$0xf]
    %v817 = vld [vmem:[#allocation8 + $0x2c] sm:$0xf]
    %v818 = vld [vmem:[#allocation8 + $0x30] sm:$0xf]
    %v819 = vld [vmem:[#allocation8 + $0x34] sm:$0xf]
    %v820 = vld [vmem:[#allocation8 + $0x38] sm:$0xf]
    %v821 = vld [vmem:[#allocation8 + $0x3c] sm:$0xf]
    %v822 = vld [vmem:[#allocation8 + $0x40] sm:$0xf]
    %v823 = vld [vmem:[#allocation8 + $0x44] sm:$0xf]
    %v824 = vld [vmem:[#allocation8 + $0x48] sm:$0xf]
    %v825 = vld [vmem:[#allocation8 + $0x4c] sm:$0xf]
    %v826 = vld [vmem:[#allocation8 + $0x50] sm:$0xf]
    %v827 = vld [vmem:[#allocation8 + $0x54] sm:$0xf]
    %v828 = vld [vmem:[#allocation8 + $0x58] sm:$0xf]
    %v829 = vld [vmem:[#allocation8 + $0x5c] sm:$0xf]
    %v830 = vld [vmem:[#allocation8 + $0x60] sm:$0xf]
    %v831 = vld [vmem:[#allocation8 + $0x64] sm:$0xf]
    %v832 = vld [vmem:[#allocation8 + $0x68] sm:$0xf]
    %v833 = vld [vmem:[#allocation8 + $0x6c] sm:$0xf]
    %v834 = vld [vmem:[#allocation8 + $0x70] sm:$0xf]
    %v835 = vld [vmem:[#allocation8 + $0x74] sm:$0xf]
    %v836 = vld [vmem:[#allocation8 + $0x78] sm:$0xf]
    %v837 = vld [vmem:[#allocation8 + $0x7c] sm:$0xf]
    %v854 = vunpack.c.l.b16 %v822
    %v855 = vunpack.c.l.b16 %v823
    %v856 = vunpack.c.l.b16 %v824
    %v857 = vunpack.c.l.b16 %v825
    %v858 = vunpack.c.l.b16 %v826
    %v859 = vunpack.c.l.b16 %v827
    %v860 = vunpack.c.l.b16 %v828
    %v861 = vunpack.c.l.b16 %v829
    %v862 = vunpack.c.l.b16 %v830
    %v863 = vunpack.c.l.b16 %v831
    %v864 = vunpack.c.l.b16 %v832
    %v865 = vunpack.c.l.b16 %v833
    %v866 = vunpack.c.l.b16 %v834
    %v867 = vunpack.c.l.b16 %v835
    %v868 = vunpack.c.l.b16 %v836
    %v869 = vunpack.c.l.b16 %v837
    %v870 = vpack.c.b16 %v855, %v854
    %v871 = vpack.c.b16 %v857, %v856
    %v872 = vpack.c.b16 %v859, %v858
    %v873 = vpack.c.b16 %v861, %v860
    %v874 = vpack.c.b16 %v863, %v862
    %v875 = vpack.c.b16 %v865, %v864
    %v876 = vpack.c.b16 %v867, %v866
    %v877 = vpack.c.b16 %v869, %v868
    %886 = vmatprep.subr.bf16.mxu0 0
    %887 = vmatpush1.bf16.msra.mxu0 %v870
    %888 = vmatprep.subr.bf16.mxu0 0
    %889 = vmatpush1.bf16.msra.mxu0 %v871
    %890 = vmatprep.subr.bf16.mxu0 0
    %891 = vmatpush1.bf16.msra.mxu0 %v872
    %892 = vmatprep.subr.bf16.mxu0 0
    %893 = vmatpush1.bf16.msra.mxu0 %v873
    %894 = vmatprep.subr.bf16.mxu0 0
    %895 = vmatpush1.bf16.msra.mxu0 %v874
    %896 = vmatprep.subr.bf16.mxu0 0
    %897 = vmatpush1.bf16.msra.mxu0 %v875
    %898 = vmatprep.subr.bf16.mxu0 0
    %899 = vmatpush1.bf16.msra.mxu0 %v876
    %900 = vmatprep.subr.bf16.mxu0 0
    %901 = vmatpush1.bf16.msra.mxu0 %v877
    %902 = vmatprep.subr.bf16.mxu0 0
    %903 = vmatpush1.bf16.msra.mxu0 0
    %904 = vmatprep.subr.bf16.mxu0 0
    %905 = vmatpush1.bf16.msra.mxu0 0
    %906 = vmatprep.subr.bf16.mxu0 0
    %907 = vmatpush1.bf16.msra.mxu0 0
    %908 = vmatprep.subr.bf16.mxu0 0
    %909 = vmatpush1.bf16.msra.mxu0 0
    %910 = vmatprep.subr.bf16.mxu0 0
    %911 = vmatpush1.bf16.msra.mxu0 0
    %912 = vmatprep.subr.bf16.mxu0 0
    %913 = vmatpush1.bf16.msra.mxu0 0
    %914 = vmatprep.subr.bf16.mxu0 0
    %915 = vmatpush1.bf16.msra.mxu0 0
    %916 = vmatprep.subr.bf16.mxu0 0
    %917 = vmatpush1.bf16.msra.mxu0 0
    %918 = vmatprep.mubr.bf16.mxu0 0
    %919 = vmatmul.mubr.bf16.gmra.mrb[0].mxu0 %v693
    %v920 = vpop.f32.mrb[0].mxu0
    %v921 = vadd.f32 0.0, %v920
    %v922 = vpop.f32.mrb[0].mxu0
    %v923 = vpop.f32.mrb[0].mxu0
    %v924 = vadd.f32 0.0, %v923
    %v925 = vpop.f32.mrb[0].mxu0
    %926 = vmatprep.mubr.bf16.mxu0 0
    %927 = vmatmul.mubr.bf16.gmra.mrb[0].mxu0 %v694
    %v928 = vpop.f32.mrb[0].mxu0
    %v929 = vadd.f32 0.0, %v928
    %v930 = vpop.f32.mrb[0].mxu0
    %v931 = vpop.f32.mrb[0].mxu0
    %v932 = vadd.f32 0.0, %v931
    %v933 = vpop.f32.mrb[0].mxu0
    %934 = vmatprep.mubr.bf16.mxu0 0
    %935 = vmatmul.mubr.bf16.gmra.mrb[0].mxu0 %v695
    %v936 = vpop.f32.mrb[0].mxu0
    %v937 = vadd.f32 0.0, %v936
    %v938 = vpop.f32.mrb[0].mxu0
    %v939 = vpop.f32.mrb[0].mxu0
    %v940 = vadd.f32 0.0, %v939
    %v941 = vpop.f32.mrb[0].mxu0
    %942 = vmatprep.mubr.bf16.mxu0 0
    %943 = vmatmul.mubr.bf16.gmra.mrb[0].mxu0 %v696
    %v944 = vpop.f32.mrb[0].mxu0
    %v945 = vadd.f32 0.0, %v944
    %v946 = vpop.f32.mrb[0].mxu0
    %v947 = vpop.f32.mrb[0].mxu0
    %v948 = vadd.f32 0.0, %v947
    %v949 = vpop.f32.mrb[0].mxu0
    %950 = vmatprep.mubr.bf16.mxu0 0
    %951 = vmatmul.mubr.bf16.gmra.mrb[0].mxu0 %v697
    %v952 = vpop.f32.mrb[0].mxu0
    %v953 = vadd.f32 0.0, %v952
    %v954 = vpop.f32.mrb[0].mxu0
    %v955 = vpop.f32.mrb[0].mxu0
    %v956 = vadd.f32 0.0, %v955
    %v957 = vpop.f32.mrb[0].mxu0
    %958 = vmatprep.mubr.bf16.mxu0 0
    %959 = vmatmul.mubr.bf16.gmra.mrb[0].mxu0 %v698
    %v960 = vpop.f32.mrb[0].mxu0
    %v961 = vadd.f32 0.0, %v960
    %v962 = vpop.f32.mrb[0].mxu0
    %v963 = vpop.f32.mrb[0].mxu0
    %v964 = vadd.f32 0.0, %v963
    %v965 = vpop.f32.mrb[0].mxu0
    %966 = vmatprep.mubr.bf16.mxu0 0
    %967 = vmatmul.mubr.bf16.gmra.mrb[0].mxu0 %v699
    %v968 = vpop.f32.mrb[0].mxu0
    %v969 = vadd.f32 0.0, %v968
    %v970 = vpop.f32.mrb[0].mxu0
    %v971 = vpop.f32.mrb[0].mxu0
    %v972 = vadd.f32 0.0, %v971
    %v973 = vpop.f32.mrb[0].mxu0
    %974 = vmatprep.mubr.bf16.mxu0 0
    %975 = vmatmul.mubr.bf16.gmra.mrb[0].mxu0 %v700
    %v976 = vpop.f32.mrb[0].mxu0
    %v977 = vadd.f32 0.0, %v976
    %v978 = vpop.f32.mrb[0].mxu0
    %v979 = vpop.f32.mrb[0].mxu0
    %v980 = vadd.f32 0.0, %v979
    %v981 = vpop.f32.mrb[0].mxu0
    %982 = vdwg.mxu0
    %v999 = vunpack.c.l.b16 %v806
    %v1000 = vunpack.c.l.b16 %v807
    %v1001 = vunpack.c.l.b16 %v808
    %v1002 = vunpack.c.l.b16 %v809
    %v1003 = vunpack.c.l.b16 %v810
    %v1004 = vunpack.c.l.b16 %v811
    %v1005 = vunpack.c.l.b16 %v812
    %v1006 = vunpack.c.l.b16 %v813
    %v1007 = vunpack.c.l.b16 %v814
    %v1008 = vunpack.c.l.b16 %v815
    %v1009 = vunpack.c.l.b16 %v816
    %v1010 = vunpack.c.l.b16 %v817
    %v1011 = vunpack.c.l.b16 %v818
    %v1012 = vunpack.c.l.b16 %v819
    %v1013 = vunpack.c.l.b16 %v820
    %v1014 = vunpack.c.l.b16 %v821
    %v1015 = vpack.c.b16 %v1000, %v999
    %v1016 = vpack.c.b16 %v1002, %v1001
    %v1017 = vpack.c.b16 %v1004, %v1003
    %v1018 = vpack.c.b16 %v1006, %v1005
    %v1019 = vpack.c.b16 %v1008, %v1007
    %v1020 = vpack.c.b16 %v1010, %v1009
    %v1021 = vpack.c.b16 %v1012, %v1011
    %v1022 = vpack.c.b16 %v1014, %v1013
    %1031 = vmatprep.subr.bf16.mxu0 0
    %1032 = vmatpush1.bf16.msra.mxu0 %v1015
    %1033 = vmatprep.subr.bf16.mxu0 0
    %1034 = vmatpush1.bf16.msra.mxu0 %v1016
    %1035 = vmatprep.subr.bf16.mxu0 0
    %1036 = vmatpush1.bf16.msra.mxu0 %v1017
    %1037 = vmatprep.subr.bf16.mxu0 0
    %1038 = vmatpush1.bf16.msra.mxu0 %v1018
    %1039 = vmatprep.subr.bf16.mxu0 0
    %1040 = vmatpush1.bf16.msra.mxu0 %v1019
    %1041 = vmatprep.subr.bf16.mxu0 0
    %1042 = vmatpush1.bf16.msra.mxu0 %v1020
    %1043 = vmatprep.subr.bf16.mxu0 0
    %1044 = vmatpush1.bf16.msra.mxu0 %v1021
    %1045 = vmatprep.subr.bf16.mxu0 0
    %1046 = vmatpush1.bf16.msra.mxu0 %v1022
    %1047 = vmatprep.subr.bf16.mxu0 0
    %1048 = vmatpush1.bf16.msra.mxu0 0
    %1049 = vmatprep.subr.bf16.mxu0 0
    %1050 = vmatpush1.bf16.msra.mxu0 0
    %1051 = vmatprep.subr.bf16.mxu0 0
    %1052 = vmatpush1.bf16.msra.mxu0 0
    %1053 = vmatprep.subr.bf16.mxu0 0
    %1054 = vmatpush1.bf16.msra.mxu0 0
    %1055 = vmatprep.subr.bf16.mxu0 0
    %1056 = vmatpush1.bf16.msra.mxu0 0
    %1057 = vmatprep.subr.bf16.mxu0 0
    %1058 = vmatpush1.bf16.msra.mxu0 0
    %1059 = vmatprep.subr.bf16.mxu0 0
    %1060 = vmatpush1.bf16.msra.mxu0 0
    %1061 = vmatprep.subr.bf16.mxu0 0
    %1062 = vmatpush1.bf16.msra.mxu0 0
    %1063 = vmatprep.mubr.bf16.mxu0 0
    %1064 = vmatmul.mubr.bf16.gmra.mrb[0].mxu0 %v798
    %v1065 = vpop.f32.mrb[0].mxu0
    %v1066 = vadd.f32 %v921, %v1065
    %v1067 = vpop.f32.mrb[0].mxu0
    %v1068 = vpop.f32.mrb[0].mxu0
    %v1069 = vadd.f32 %v924, %v1068
    %v1070 = vpop.f32.mrb[0].mxu0
    %1071 = vmatprep.mubr.bf16.mxu0 0
    %1072 = vmatmul.mubr.bf16.gmra.mrb[0].mxu0 %v799
    %v1073 = vpop.f32.mrb[0].mxu0
    %v1074 = vadd.f32 %v929, %v1073
    %v1075 = vpop.f32.mrb[0].mxu0
    %v1076 = vpop.f32.mrb[0].mxu0
    %v1077 = vadd.f32 %v932, %v1076
    %v1078 = vpop.f32.mrb[0].mxu0
    %1079 = vmatprep.mubr.bf16.mxu0 0
    %1080 = vmatmul.mubr.bf16.gmra.mrb[0].mxu0 %v800
    %v1081 = vpop.f32.mrb[0].mxu0
    %v1082 = vadd.f32 %v937, %v1081
    %v1083 = vpop.f32.mrb[0].mxu0
    %v1084 = vpop.f32.mrb[0].mxu0
    %v1085 = vadd.f32 %v940, %v1084
    %v1086 = vpop.f32.mrb[0].mxu0
    %1087 = vmatprep.mubr.bf16.mxu0 0
    %1088 = vmatmul.mubr.bf16.gmra.mrb[0].mxu0 %v801
    %v1089 = vpop.f32.mrb[0].mxu0
    %v1090 = vadd.f32 %v945, %v1089
    %v1091 = vpop.f32.mrb[0].mxu0
    %v1092 = vpop.f32.mrb[0].mxu0
    %v1093 = vadd.f32 %v948, %v1092
    %v1094 = vpop.f32.mrb[0].mxu0
    %1095 = vmatprep.mubr.bf16.mxu0 0
    %1096 = vmatmul.mubr.bf16.gmra.mrb[0].mxu0 %v802
    %v1097 = vpop.f32.mrb[0].mxu0
    %v1098 = vadd.f32 %v953, %v1097
    %v1099 = vpop.f32.mrb[0].mxu0
    %v1100 = vpop.f32.mrb[0].mxu0
    %v1101 = vadd.f32 %v956, %v1100
    %v1102 = vpop.f32.mrb[0].mxu0
    %1103 = vmatprep.mubr.bf16.mxu0 0
    %1104 = vmatmul.mubr.bf16.gmra.mrb[0].mxu0 %v803
    %v1105 = vpop.f32.mrb[0].mxu0
    %v1106 = vadd.f32 %v961, %v1105
    %v1107 = vpop.f32.mrb[0].mxu0
    %v1108 = vpop.f32.mrb[0].mxu0
    %v1109 = vadd.f32 %v964, %v1108
    %v1110 = vpop.f32.mrb[0].mxu0
    %1111 = vmatprep.mubr.bf16.mxu0 0
    %1112 = vmatmul.mubr.bf16.gmra.mrb[0].mxu0 %v804
    %v1113 = vpop.f32.mrb[0].mxu0
    %v1114 = vadd.f32 %v969, %v1113
    %v1115 = vpop.f32.mrb[0].mxu0
    %v1116 = vpop.f32.mrb[0].mxu0
    %v1117 = vadd.f32 %v972, %v1116
    %v1118 = vpop.f32.mrb[0].mxu0
    %1119 = vmatprep.mubr.bf16.mxu0 0
    %1120 = vmatmul.mubr.bf16.gmra.mrb[0].mxu0 %v805
    %v1121 = vpop.f32.mrb[0].mxu0
    %v1122 = vadd.f32 %v977, %v1121
    %v1123 = vpop.f32.mrb[0].mxu0
    %v1124 = vpop.f32.mrb[0].mxu0
    %v1125 = vadd.f32 %v980, %v1124
    %v1126 = vpop.f32.mrb[0].mxu0
    %1127 = vdwg.mxu0
    %v1128 = vld [vmem:[%s5] sm:$0x1]
    %v1130 = vlaneseq
    %v1131 = vshrl.u32 %v1130, 7
    %v1132 = vsub.s32 0, %v1131
    %v1133 = vrot.slane %v1128, %v1132
    %v1135 = vadd.f32 %v1066, %v1133
    %v1136 = vadd.f32 %v1069, %v1133
    %v1137 = vadd.f32 %v1074, %v1133
    %v1138 = vadd.f32 %v1077, %v1133
    %v1139 = vadd.f32 %v1082, %v1133
    %v1140 = vadd.f32 %v1085, %v1133
    %v1141 = vadd.f32 %v1090, %v1133
    %v1142 = vadd.f32 %v1093, %v1133
    %v1143 = vadd.f32 %v1098, %v1133
    %v1144 = vadd.f32 %v1101, %v1133
    %v1145 = vadd.f32 %v1106, %v1133
    %v1146 = vadd.f32 %v1109, %v1133
    %v1147 = vadd.f32 %v1114, %v1133
    %v1148 = vadd.f32 %v1117, %v1133
    %v1149 = vadd.f32 %v1122, %v1133
    %v1150 = vadd.f32 %v1125, %v1133
    %v1151 = vmax.f32 %v1135, 0.0
    %v1152 = vmax.f32 %v1136, 0.0
    %v1153 = vmax.f32 %v1137, 0.0
    %v1154 = vmax.f32 %v1138, 0.0
    %v1155 = vmax.f32 %v1139, 0.0
    %v1156 = vmax.f32 %v1140, 0.0
    %v1157 = vmax.f32 %v1141, 0.0
    %v1158 = vmax.f32 %v1142, 0.0
    %v1159 = vmax.f32 %v1143, 0.0
    %v1160 = vmax.f32 %v1144, 0.0
    %v1161 = vmax.f32 %v1145, 0.0
    %v1162 = vmax.f32 %v1146, 0.0
    %v1163 = vmax.f32 %v1147, 0.0
    %v1164 = vmax.f32 %v1148, 0.0
    %v1165 = vmax.f32 %v1149, 0.0
    %v1166 = vmax.f32 %v1150, 0.0
    %v1167 = vpack.c.bf16 %v1152, %v1151
    %v1168 = vpack.c.bf16 %v1154, %v1153
    %v1169 = vpack.c.bf16 %v1156, %v1155
    %v1170 = vpack.c.bf16 %v1158, %v1157
    %v1171 = vpack.c.bf16 %v1160, %v1159
    %v1172 = vpack.c.bf16 %v1162, %v1161
    %v1173 = vpack.c.bf16 %v1164, %v1163
    %v1174 = vpack.c.bf16 %v1166, %v1165
    %1175 = vmatprep.subr.bf16.mxu0 0
    %1176 = vmatpush1.bf16.msra.mxu0 %v1167
    %1177 = vmatprep.subr.bf16.mxu0 0
    %1178 = vmatpush1.bf16.msra.mxu0 %v1168
    %1179 = vmatprep.subr.bf16.mxu0 0
    %1180 = vmatpush1.bf16.msra.mxu0 %v1169
    %1181 = vmatprep.subr.bf16.mxu0 0
    %1182 = vmatpush1.bf16.msra.mxu0 %v1170
    %1183 = vmatprep.subr.bf16.mxu0 0
    %1184 = vmatpush1.bf16.msra.mxu0 %v1171
    %1185 = vmatprep.subr.bf16.mxu0 0
    %1186 = vmatpush1.bf16.msra.mxu0 %v1172
    %1187 = vmatprep.subr.bf16.mxu0 0
    %1188 = vmatpush1.bf16.msra.mxu0 %v1173
    %1189 = vmatprep.subr.bf16.mxu0 0
    %1190 = vmatpush1.bf16.msra.mxu0 %v1174
    %1191 = vmatprep.subr.bf16.mxu0 0
    %1192 = vmatpush1.bf16.msra.mxu0 0
    %1193 = vmatprep.subr.bf16.mxu0 0
    %1194 = vmatpush1.bf16.msra.mxu0 0
    %1195 = vmatprep.subr.bf16.mxu0 0
    %1196 = vmatpush1.bf16.msra.mxu0 0
    %1197 = vmatprep.subr.bf16.mxu0 0
    %1198 = vmatpush1.bf16.msra.mxu0 0
    %1199 = vmatprep.subr.bf16.mxu0 0
    %1200 = vmatpush1.bf16.msra.mxu0 0
    %1201 = vmatprep.subr.bf16.mxu0 0
    %1202 = vmatpush1.bf16.msra.mxu0 0
    %1203 = vmatprep.subr.bf16.mxu0 0
    %1204 = vmatpush1.bf16.msra.mxu0 0
    %1205 = vmatprep.subr.bf16.mxu0 0
    %1206 = vmatpush1.bf16.msra.mxu0 0
    %1207 = vmatprep.mubr.bf16.mxu0 0
    %1208 = vmatmul.mubr.bf16.gmra.mrb[0].mxu0 %v163
    %v1209 = vpop.f32.mrb[0].mxu0
    %v1210 = vadd.f32 0.0, %v1209
    %v1211 = vpop.f32.mrb[0].mxu0
    %v1212 = vpop.f32.mrb[0].mxu0
    %v1213 = vadd.f32 0.0, %v1212
    %v1214 = vpop.f32.mrb[0].mxu0
    %1215 = vmatprep.mubr.bf16.mxu0 0
    %1216 = vmatmul.mubr.bf16.gmra.mrb[0].mxu0 %v164
    %v1217 = vpop.f32.mrb[0].mxu0
    %v1218 = vadd.f32 0.0, %v1217
    %v1219 = vpop.f32.mrb[0].mxu0
    %v1220 = vpop.f32.mrb[0].mxu0
    %v1221 = vadd.f32 0.0, %v1220
    %v1222 = vpop.f32.mrb[0].mxu0
    %1223 = vmatprep.mubr.bf16.mxu0 0
    %1224 = vmatmul.mubr.bf16.gmra.mrb[0].mxu0 %v165
    %v1225 = vpop.f32.mrb[0].mxu0
    %v1226 = vadd.f32 0.0, %v1225
    %v1227 = vpop.f32.mrb[0].mxu0
    %v1228 = vpop.f32.mrb[0].mxu0
    %v1229 = vadd.f32 0.0, %v1228
    %v1230 = vpop.f32.mrb[0].mxu0
    %1231 = vmatprep.mubr.bf16.mxu0 0
    %1232 = vmatmul.mubr.bf16.gmra.mrb[0].mxu0 %v166
    %v1233 = vpop.f32.mrb[0].mxu0
    %v1234 = vadd.f32 0.0, %v1233
    %v1235 = vpop.f32.mrb[0].mxu0
    %v1236 = vpop.f32.mrb[0].mxu0
    %v1237 = vadd.f32 0.0, %v1236
    %v1238 = vpop.f32.mrb[0].mxu0
    %1239 = vmatprep.mubr.bf16.mxu0 0
    %1240 = vmatmul.mubr.bf16.gmra.mrb[0].mxu0 %v167
    %v1241 = vpop.f32.mrb[0].mxu0
    %v1242 = vadd.f32 0.0, %v1241
    %v1243 = vpop.f32.mrb[0].mxu0
    %v1244 = vpop.f32.mrb[0].mxu0
    %v1245 = vadd.f32 0.0, %v1244
    %v1246 = vpop.f32.mrb[0].mxu0
    %1247 = vmatprep.mubr.bf16.mxu0 0
    %1248 = vmatmul.mubr.bf16.gmra.mrb[0].mxu0 %v168
    %v1249 = vpop.f32.mrb[0].mxu0
    %v1250 = vadd.f32 0.0, %v1249
    %v1251 = vpop.f32.mrb[0].mxu0
    %v1252 = vpop.f32.mrb[0].mxu0
    %v1253 = vadd.f32 0.0, %v1252
    %v1254 = vpop.f32.mrb[0].mxu0
    %1255 = vmatprep.mubr.bf16.mxu0 0
    %1256 = vmatmul.mubr.bf16.gmra.mrb[0].mxu0 %v169
    %v1257 = vpop.f32.mrb[0].mxu0
    %v1258 = vadd.f32 0.0, %v1257
    %v1259 = vpop.f32.mrb[0].mxu0
    %v1260 = vpop.f32.mrb[0].mxu0
    %v1261 = vadd.f32 0.0, %v1260
    %v1262 = vpop.f32.mrb[0].mxu0
    %1263 = vmatprep.mubr.bf16.mxu0 0
    %1264 = vmatmul.mubr.bf16.gmra.mrb[0].mxu0 %v170
    %v1265 = vpop.f32.mrb[0].mxu0
    %v1266 = vadd.f32 0.0, %v1265
    %v1267 = vpop.f32.mrb[0].mxu0
    %v1268 = vpop.f32.mrb[0].mxu0
    %v1269 = vadd.f32 0.0, %v1268
    %v1270 = vpop.f32.mrb[0].mxu0
    %1271 = vdwg.mxu0
    %v1272 = vpack.c.bf16 %v1213, %v1210
    %v1273 = vpack.c.bf16 %v1221, %v1218
    %v1274 = vpack.c.bf16 %v1229, %v1226
    %v1275 = vpack.c.bf16 %v1237, %v1234
    %v1276 = vpack.c.bf16 %v1245, %v1242
    %v1277 = vpack.c.bf16 %v1253, %v1250
    %v1278 = vpack.c.bf16 %v1261, %v1258
    %v1279 = vpack.c.bf16 %v1269, %v1266
    %v1280 = vld [vmem:[#allocation10] sm:$0xf]
    %v1281 = vld [vmem:[#allocation10 + $0x4] sm:$0xf]
    %v1282 = vld [vmem:[#allocation10 + $0x8] sm:$0xf]
    %v1283 = vld [vmem:[#allocation10 + $0xc] sm:$0xf]
    %v1284 = vld [vmem:[#allocation10 + $0x10] sm:$0xf]
    %v1285 = vld [vmem:[#allocation10 + $0x14] sm:$0xf]
    %v1286 = vld [vmem:[#allocation10 + $0x18] sm:$0xf]
    %v1287 = vld [vmem:[#allocation10 + $0x1c] sm:$0xf]
    %v1288 = vld [vmem:[#allocation10 + $0x20] sm:$0xf]
    %v1289 = vld [vmem:[#allocation10 + $0x24] sm:$0xf]
    %v1290 = vld [vmem:[#allocation10 + $0x28] sm:$0xf]
    %v1291 = vld [vmem:[#allocation10 + $0x2c] sm:$0xf]
    %v1292 = vld [vmem:[#allocation10 + $0x30] sm:$0xf]
    %v1293 = vld [vmem:[#allocation10 + $0x34] sm:$0xf]
    %v1294 = vld [vmem:[#allocation10 + $0x38] sm:$0xf]
    %v1295 = vld [vmem:[#allocation10 + $0x3c] sm:$0xf]
    %v1296 = vld [vmem:[#allocation10 + $0x40] sm:$0xf]
    %v1297 = vld [vmem:[#allocation10 + $0x44] sm:$0xf]
    %v1298 = vld [vmem:[#allocation10 + $0x48] sm:$0xf]
    %v1299 = vld [vmem:[#allocation10 + $0x4c] sm:$0xf]
    %v1300 = vld [vmem:[#allocation10 + $0x50] sm:$0xf]
    %v1301 = vld [vmem:[#allocation10 + $0x54] sm:$0xf]
    %v1302 = vld [vmem:[#allocation10 + $0x58] sm:$0xf]
    %v1303 = vld [vmem:[#allocation10 + $0x5c] sm:$0xf]
    %v1304 = vld [vmem:[#allocation10 + $0x60] sm:$0xf]
    %v1305 = vld [vmem:[#allocation10 + $0x64] sm:$0xf]
    %v1306 = vld [vmem:[#allocation10 + $0x68] sm:$0xf]
    %v1307 = vld [vmem:[#allocation10 + $0x6c] sm:$0xf]
    %v1308 = vld [vmem:[#allocation10 + $0x70] sm:$0xf]
    %v1309 = vld [vmem:[#allocation10 + $0x74] sm:$0xf]
    %v1310 = vld [vmem:[#allocation10 + $0x78] sm:$0xf]
    %v1311 = vld [vmem:[#allocation10 + $0x7c] sm:$0xf]
    %v1328 = vunpack.c.l.b16 %v1296
    %v1329 = vunpack.c.l.b16 %v1297
    %v1330 = vunpack.c.l.b16 %v1298
    %v1331 = vunpack.c.l.b16 %v1299
    %v1332 = vunpack.c.l.b16 %v1300
    %v1333 = vunpack.c.l.b16 %v1301
    %v1334 = vunpack.c.l.b16 %v1302
    %v1335 = vunpack.c.l.b16 %v1303
    %v1336 = vunpack.c.l.b16 %v1304
    %v1337 = vunpack.c.l.b16 %v1305
    %v1338 = vunpack.c.l.b16 %v1306
    %v1339 = vunpack.c.l.b16 %v1307
    %v1340 = vunpack.c.l.b16 %v1308
    %v1341 = vunpack.c.l.b16 %v1309
    %v1342 = vunpack.c.l.b16 %v1310
    %v1343 = vunpack.c.l.b16 %v1311
    %v1344 = vpack.c.b16 %v1329, %v1328
    %v1345 = vpack.c.b16 %v1331, %v1330
    %v1346 = vpack.c.b16 %v1333, %v1332
    %v1347 = vpack.c.b16 %v1335, %v1334
    %v1348 = vpack.c.b16 %v1337, %v1336
    %v1349 = vpack.c.b16 %v1339, %v1338
    %v1350 = vpack.c.b16 %v1341, %v1340
    %v1351 = vpack.c.b16 %v1343, %v1342
    %1360 = vmatprep.subr.bf16.mxu0 0
    %1361 = vmatpush1.bf16.msra.mxu0 %v1344
    %1362 = vmatprep.subr.bf16.mxu0 0
    %1363 = vmatpush1.bf16.msra.mxu0 %v1345
    %1364 = vmatprep.subr.bf16.mxu0 0
    %1365 = vmatpush1.bf16.msra.mxu0 %v1346
    %1366 = vmatprep.subr.bf16.mxu0 0
    %1367 = vmatpush1.bf16.msra.mxu0 %v1347
    %1368 = vmatprep.subr.bf16.mxu0 0
    %1369 = vmatpush1.bf16.msra.mxu0 %v1348
    %1370 = vmatprep.subr.bf16.mxu0 0
    %1371 = vmatpush1.bf16.msra.mxu0 %v1349
    %1372 = vmatprep.subr.bf16.mxu0 0
    %1373 = vmatpush1.bf16.msra.mxu0 %v1350
    %1374 = vmatprep.subr.bf16.mxu0 0
    %1375 = vmatpush1.bf16.msra.mxu0 %v1351
    %1376 = vmatprep.subr.bf16.mxu0 0
    %1377 = vmatpush1.bf16.msra.mxu0 0
    %1378 = vmatprep.subr.bf16.mxu0 0
    %1379 = vmatpush1.bf16.msra.mxu0 0
    %1380 = vmatprep.subr.bf16.mxu0 0
    %1381 = vmatpush1.bf16.msra.mxu0 0
    %1382 = vmatprep.subr.bf16.mxu0 0
    %1383 = vmatpush1.bf16.msra.mxu0 0
    %1384 = vmatprep.subr.bf16.mxu0 0
    %1385 = vmatpush1.bf16.msra.mxu0 0
    %1386 = vmatprep.subr.bf16.mxu0 0
    %1387 = vmatpush1.bf16.msra.mxu0 0
    %1388 = vmatprep.subr.bf16.mxu0 0
    %1389 = vmatpush1.bf16.msra.mxu0 0
    %1390 = vmatprep.subr.bf16.mxu0 0
    %1391 = vmatpush1.bf16.msra.mxu0 0
    %1392 = vmatprep.mubr.bf16.mxu0 0
    %1393 = vmatmul.mubr.bf16.gmra.mrb[0].mxu0 %v1167
    %v1394 = vpop.f32.mrb[0].mxu0
    %v1395 = vadd.f32 0.0, %v1394
    %v1396 = vpop.f32.mrb[0].mxu0
    %v1397 = vpop.f32.mrb[0].mxu0
    %v1398 = vadd.f32 0.0, %v1397
    %v1399 = vpop.f32.mrb[0].mxu0
    %1400 = vmatprep.mubr.bf16.mxu0 0
    %1401 = vmatmul.mubr.bf16.gmra.mrb[0].mxu0 %v1168
    %v1402 = vpop.f32.mrb[0].mxu0
    %v1403 = vadd.f32 0.0, %v1402
    %v1404 = vpop.f32.mrb[0].mxu0
    %v1405 = vpop.f32.mrb[0].mxu0
    %v1406 = vadd.f32 0.0, %v1405
    %v1407 = vpop.f32.mrb[0].mxu0
    %1408 = vmatprep.mubr.bf16.mxu0 0
    %1409 = vmatmul.mubr.bf16.gmra.mrb[0].mxu0 %v1169
    %v1410 = vpop.f32.mrb[0].mxu0
    %v1411 = vadd.f32 0.0, %v1410
    %v1412 = vpop.f32.mrb[0].mxu0
    %v1413 = vpop.f32.mrb[0].mxu0
    %v1414 = vadd.f32 0.0, %v1413
    %v1415 = vpop.f32.mrb[0].mxu0
    %1416 = vmatprep.mubr.bf16.mxu0 0
    %1417 = vmatmul.mubr.bf16.gmra.mrb[0].mxu0 %v1170
    %v1418 = vpop.f32.mrb[0].mxu0
    %v1419 = vadd.f32 0.0, %v1418
    %v1420 = vpop.f32.mrb[0].mxu0
    %v1421 = vpop.f32.mrb[0].mxu0
    %v1422 = vadd.f32 0.0, %v1421
    %v1423 = vpop.f32.mrb[0].mxu0
    %1424 = vmatprep.mubr.bf16.mxu0 0
    %1425 = vmatmul.mubr.bf16.gmra.mrb[0].mxu0 %v1171
    %v1426 = vpop.f32.mrb[0].mxu0
    %v1427 = vadd.f32 0.0, %v1426
    %v1428 = vpop.f32.mrb[0].mxu0
    %v1429 = vpop.f32.mrb[0].mxu0
    %v1430 = vadd.f32 0.0, %v1429
    %v1431 = vpop.f32.mrb[0].mxu0
    %1432 = vmatprep.mubr.bf16.mxu0 0
    %1433 = vmatmul.mubr.bf16.gmra.mrb[0].mxu0 %v1172
    %v1434 = vpop.f32.mrb[0].mxu0
    %v1435 = vadd.f32 0.0, %v1434
    %v1436 = vpop.f32.mrb[0].mxu0
    %v1437 = vpop.f32.mrb[0].mxu0
    %v1438 = vadd.f32 0.0, %v1437
    %v1439 = vpop.f32.mrb[0].mxu0
    %1440 = vmatprep.mubr.bf16.mxu0 0
    %1441 = vmatmul.mubr.bf16.gmra.mrb[0].mxu0 %v1173
    %v1442 = vpop.f32.mrb[0].mxu0
    %v1443 = vadd.f32 0.0, %v1442
    %v1444 = vpop.f32.mrb[0].mxu0
    %v1445 = vpop.f32.mrb[0].mxu0
    %v1446 = vadd.f32 0.0, %v1445
    %v1447 = vpop.f32.mrb[0].mxu0
    %1448 = vmatprep.mubr.bf16.mxu0 0
    %1449 = vmatmul.mubr.bf16.gmra.mrb[0].mxu0 %v1174
    %v1450 = vpop.f32.mrb[0].mxu0
    %v1451 = vadd.f32 0.0, %v1450
    %v1452 = vpop.f32.mrb[0].mxu0
    %v1453 = vpop.f32.mrb[0].mxu0
    %v1454 = vadd.f32 0.0, %v1453
    %v1455 = vpop.f32.mrb[0].mxu0
    %1456 = vdwg.mxu0
    %v1473 = vunpack.c.l.b16 %v1280
    %v1474 = vunpack.c.l.b16 %v1281
    %v1475 = vunpack.c.l.b16 %v1282
    %v1476 = vunpack.c.l.b16 %v1283
    %v1477 = vunpack.c.l.b16 %v1284
    %v1478 = vunpack.c.l.b16 %v1285
    %v1479 = vunpack.c.l.b16 %v1286
    %v1480 = vunpack.c.l.b16 %v1287
    %v1481 = vunpack.c.l.b16 %v1288
    %v1482 = vunpack.c.l.b16 %v1289
    %v1483 = vunpack.c.l.b16 %v1290
    %v1484 = vunpack.c.l.b16 %v1291
    %v1485 = vunpack.c.l.b16 %v1292
    %v1486 = vunpack.c.l.b16 %v1293
    %v1487 = vunpack.c.l.b16 %v1294
    %v1488 = vunpack.c.l.b16 %v1295
    %v1489 = vpack.c.b16 %v1474, %v1473
    %v1490 = vpack.c.b16 %v1476, %v1475
    %v1491 = vpack.c.b16 %v1478, %v1477
    %v1492 = vpack.c.b16 %v1480, %v1479
    %v1493 = vpack.c.b16 %v1482, %v1481
    %v1494 = vpack.c.b16 %v1484, %v1483
    %v1495 = vpack.c.b16 %v1486, %v1485
    %v1496 = vpack.c.b16 %v1488, %v1487
    %1505 = vmatprep.subr.bf16.mxu0 0
    %1506 = vmatpush1.bf16.msra.mxu0 %v1489
    %1507 = vmatprep.subr.bf16.mxu0 0
    %1508 = vmatpush1.bf16.msra.mxu0 %v1490
    %1509 = vmatprep.subr.bf16.mxu0 0
    %1510 = vmatpush1.bf16.msra.mxu0 %v1491
    %1511 = vmatprep.subr.bf16.mxu0 0
    %1512 = vmatpush1.bf16.msra.mxu0 %v1492
    %1513 = vmatprep.subr.bf16.mxu0 0
    %1514 = vmatpush1.bf16.msra.mxu0 %v1493
    %1515 = vmatprep.subr.bf16.mxu0 0
    %1516 = vmatpush1.bf16.msra.mxu0 %v1494
    %1517 = vmatprep.subr.bf16.mxu0 0
    %1518 = vmatpush1.bf16.msra.mxu0 %v1495
    %1519 = vmatprep.subr.bf16.mxu0 0
    %1520 = vmatpush1.bf16.msra.mxu0 %v1496
    %1521 = vmatprep.subr.bf16.mxu0 0
    %1522 = vmatpush1.bf16.msra.mxu0 0
    %1523 = vmatprep.subr.bf16.mxu0 0
    %1524 = vmatpush1.bf16.msra.mxu0 0
    %1525 = vmatprep.subr.bf16.mxu0 0
    %1526 = vmatpush1.bf16.msra.mxu0 0
    %1527 = vmatprep.subr.bf16.mxu0 0
    %1528 = vmatpush1.bf16.msra.mxu0 0
    %1529 = vmatprep.subr.bf16.mxu0 0
    %1530 = vmatpush1.bf16.msra.mxu0 0
    %1531 = vmatprep.subr.bf16.mxu0 0
    %1532 = vmatpush1.bf16.msra.mxu0 0
    %1533 = vmatprep.subr.bf16.mxu0 0
    %1534 = vmatpush1.bf16.msra.mxu0 0
    %1535 = vmatprep.subr.bf16.mxu0 0
    %1536 = vmatpush1.bf16.msra.mxu0 0
    %1537 = vmatprep.mubr.bf16.mxu0 0
    %1538 = vmatmul.mubr.bf16.gmra.mrb[0].mxu0 %v1272
    %v1539 = vpop.f32.mrb[0].mxu0
    %v1540 = vadd.f32 %v1395, %v1539
    %v1541 = vpop.f32.mrb[0].mxu0
    %v1542 = vpop.f32.mrb[0].mxu0
    %v1543 = vadd.f32 %v1398, %v1542
    %v1544 = vpop.f32.mrb[0].mxu0
    %1545 = vmatprep.mubr.bf16.mxu0 0
    %1546 = vmatmul.mubr.bf16.gmra.mrb[0].mxu0 %v1273
    %v1547 = vpop.f32.mrb[0].mxu0
    %v1548 = vadd.f32 %v1403, %v1547
    %v1549 = vpop.f32.mrb[0].mxu0
    %v1550 = vpop.f32.mrb[0].mxu0
    %v1551 = vadd.f32 %v1406, %v1550
    %v1552 = vpop.f32.mrb[0].mxu0
    %1553 = vmatprep.mubr.bf16.mxu0 0
    %1554 = vmatmul.mubr.bf16.gmra.mrb[0].mxu0 %v1274
    %v1555 = vpop.f32.mrb[0].mxu0
    %v1556 = vadd.f32 %v1411, %v1555
    %v1557 = vpop.f32.mrb[0].mxu0
    %v1558 = vpop.f32.mrb[0].mxu0
    %v1559 = vadd.f32 %v1414, %v1558
    %v1560 = vpop.f32.mrb[0].mxu0
    %1561 = vmatprep.mubr.bf16.mxu0 0
    %1562 = vmatmul.mubr.bf16.gmra.mrb[0].mxu0 %v1275
    %v1563 = vpop.f32.mrb[0].mxu0
    %v1564 = vadd.f32 %v1419, %v1563
    %v1565 = vpop.f32.mrb[0].mxu0
    %v1566 = vpop.f32.mrb[0].mxu0
    %v1567 = vadd.f32 %v1422, %v1566
    %v1568 = vpop.f32.mrb[0].mxu0
    %1569 = vmatprep.mubr.bf16.mxu0 0
    %1570 = vmatmul.mubr.bf16.gmra.mrb[0].mxu0 %v1276
    %v1571 = vpop.f32.mrb[0].mxu0
    %v1572 = vadd.f32 %v1427, %v1571
    %v1573 = vpop.f32.mrb[0].mxu0
    %v1574 = vpop.f32.mrb[0].mxu0
    %v1575 = vadd.f32 %v1430, %v1574
    %v1576 = vpop.f32.mrb[0].mxu0
    %1577 = vmatprep.mubr.bf16.mxu0 0
    %1578 = vmatmul.mubr.bf16.gmra.mrb[0].mxu0 %v1277
    %v1579 = vpop.f32.mrb[0].mxu0
    %v1580 = vadd.f32 %v1435, %v1579
    %v1581 = vpop.f32.mrb[0].mxu0
    %v1582 = vpop.f32.mrb[0].mxu0
    %v1583 = vadd.f32 %v1438, %v1582
    %v1584 = vpop.f32.mrb[0].mxu0
    %1585 = vmatprep.mubr.bf16.mxu0 0
    %1586 = vmatmul.mubr.bf16.gmra.mrb[0].mxu0 %v1278
    %v1587 = vpop.f32.mrb[0].mxu0
    %v1588 = vadd.f32 %v1443, %v1587
    %v1589 = vpop.f32.mrb[0].mxu0
    %v1590 = vpop.f32.mrb[0].mxu0
    %v1591 = vadd.f32 %v1446, %v1590
    %v1592 = vpop.f32.mrb[0].mxu0
    %1593 = vmatprep.mubr.bf16.mxu0 0
    %1594 = vmatmul.mubr.bf16.gmra.mrb[0].mxu0 %v1279
    %v1595 = vpop.f32.mrb[0].mxu0
    %v1596 = vadd.f32 %v1451, %v1595
    %v1597 = vpop.f32.mrb[0].mxu0
    %v1598 = vpop.f32.mrb[0].mxu0
    %v1599 = vadd.f32 %v1454, %v1598
    %v1600 = vpop.f32.mrb[0].mxu0
    %1601 = vdwg.mxu0
    %v1602 = vld [vmem:[%s7] sm:$0x1]
    %v1604 = vlaneseq
    %v1605 = vshrl.u32 %v1604, 7
    %v1606 = vsub.s32 0, %v1605
    %v1607 = vrot.slane %v1602, %v1606
    %v1609 = vadd.f32 %v1540, %v1607
    %v1610 = vadd.f32 %v1543, %v1607
    %v1611 = vadd.f32 %v1548, %v1607
    %v1612 = vadd.f32 %v1551, %v1607
    %v1613 = vadd.f32 %v1556, %v1607
    %v1614 = vadd.f32 %v1559, %v1607
    %v1615 = vadd.f32 %v1564, %v1607
    %v1616 = vadd.f32 %v1567, %v1607
    %v1617 = vadd.f32 %v1572, %v1607
    %v1618 = vadd.f32 %v1575, %v1607
    %v1619 = vadd.f32 %v1580, %v1607
    %v1620 = vadd.f32 %v1583, %v1607
    %v1621 = vadd.f32 %v1588, %v1607
    %v1622 = vadd.f32 %v1591, %v1607
    %v1623 = vadd.f32 %v1596, %v1607
    %v1624 = vadd.f32 %v1599, %v1607
    %v1625 = vpack.c.bf16 %v1610, %v1609
    %v1626 = vpack.c.bf16 %v1612, %v1611
    %v1627 = vpack.c.bf16 %v1614, %v1613
    %v1628 = vpack.c.bf16 %v1616, %v1615
    %v1629 = vpack.c.bf16 %v1618, %v1617
    %v1630 = vpack.c.bf16 %v1620, %v1619
    %v1631 = vpack.c.bf16 %v1622, %v1621
    %v1632 = vpack.c.bf16 %v1624, %v1623
    %v1641 = vunpack.c.l.b16 %v1625
    %v1642 = vunpack.c.h.b16 %v1625
    %v1643 = vunpack.c.l.b16 %v1626
    %v1644 = vunpack.c.h.b16 %v1626
    %v1645 = vunpack.c.l.b16 %v1627
    %v1646 = vunpack.c.h.b16 %v1627
    %v1647 = vunpack.c.l.b16 %v1628
    %v1648 = vunpack.c.h.b16 %v1628
    %v1649 = vunpack.c.l.b16 %v1629
    %v1650 = vunpack.c.h.b16 %v1629
    %v1651 = vunpack.c.l.b16 %v1630
    %v1652 = vunpack.c.h.b16 %v1630
    %v1653 = vunpack.c.l.b16 %v1631
    %v1654 = vunpack.c.h.b16 %v1631
    %v1655 = vunpack.c.l.b16 %v1632
    %v1656 = vunpack.c.h.b16 %v1632
    %v1657 = vpack.c.b16 %v1641, %v1641
    %v1658 = vpack.c.b16 %v1642, %v1642
    %v1659 = vpack.c.b16 %v1643, %v1643
    %v1660 = vpack.c.b16 %v1644, %v1644
    %v1661 = vpack.c.b16 %v1645, %v1645
    %v1662 = vpack.c.b16 %v1646, %v1646
    %v1663 = vpack.c.b16 %v1647, %v1647
    %v1664 = vpack.c.b16 %v1648, %v1648
    %v1665 = vpack.c.b16 %v1649, %v1649
    %v1666 = vpack.c.b16 %v1650, %v1650
    %v1667 = vpack.c.b16 %v1651, %v1651
    %v1668 = vpack.c.b16 %v1652, %v1652
    %v1669 = vpack.c.b16 %v1653, %v1653
    %v1670 = vpack.c.b16 %v1654, %v1654
    %v1671 = vpack.c.b16 %v1655, %v1655
    %v1672 = vpack.c.b16 %v1656, %v1656
    %1689 = vst [vmem:[#allocation11] sm:$0xf] %v1657
    %1690 = vst [vmem:[#allocation11 + $0x4] sm:$0xf] %v1658
    %1691 = vst [vmem:[#allocation11 + $0x8] sm:$0xf] %v1659
    %1692 = vst [vmem:[#allocation11 + $0xc] sm:$0xf] %v1660
    %1693 = vst [vmem:[#allocation11 + $0x10] sm:$0xf] %v1661
    %1694 = vst [vmem:[#allocation11 + $0x14] sm:$0xf] %v1662
    %1695 = vst [vmem:[#allocation11 + $0x18] sm:$0xf] %v1663
    %1696 = vst [vmem:[#allocation11 + $0x1c] sm:$0xf] %v1664
    %1697 = vst [vmem:[#allocation11 + $0x20] sm:$0xf] %v1665
    %1698 = vst [vmem:[#allocation11 + $0x24] sm:$0xf] %v1666
    %1699 = vst [vmem:[#allocation11 + $0x28] sm:$0xf] %v1667
    %1700 = vst [vmem:[#allocation11 + $0x2c] sm:$0xf] %v1668
    %1701 = vst [vmem:[#allocation11 + $0x30] sm:$0xf] %v1669
    %1702 = vst [vmem:[#allocation11 + $0x34] sm:$0xf] %v1670
    %1703 = vst [vmem:[#allocation11 + $0x38] sm:$0xf] %v1671
    %1704 = vst [vmem:[#allocation11 + $0x3c] sm:$0xf] %v1672
    // Predicated region
    $region54: #{tpu_custom_call.1} parent=1 // pred_check
      _
    $region55: #{tpu_custom_call.1} parent=1 // pred_check_branch
      %1706 = sbr.rel (0) target = $region57
    $region56: #{tpu_custom_call.1} parent=1 // pred_region
      %s1708 = ssub.s32 1024, 1024
      %1709 = vsyncadd [#allocation4], %s1708
      %s1710 = sshll.u32 [#allocation11], 4
      %s1711 = int_to_ptr.vmem [resolvable:$true] %s1710
      %1716 = dma.vmem_to_hbm [thread:$0]  %s1711, 1024, %s8, [#allocation4], 64, 64, 4
    $region57: #{tpu_custom_call.1} parent=1 // pred_fallthru
      _
    // Predicated region
    $region58: #{tpu_custom_call.1} parent=1 // pred_check
      _
    $region59: #{tpu_custom_call.1} parent=1 // pred_check_branch
      %1718 = sbr.rel (0) target = $region61
    $region60: #{tpu_custom_call.1} parent=1 // pred_region
      %1719 = dma.done [#allocation4], 1024
    $region61: #{tpu_custom_call.1} parent=1 // pred_fallthru
      _
    %1720 = vsyncpa [#allocation3], 1
    %1721 = vsyncpa [#allocation6], 1
    %1722 = vsyncpa [#allocation9], 1
    %1723 = vsyncpa [#allocation4], 1

</llo_original>
